<compile_context>
chip_gen: v7x
topology: tpu7x:2x2x1
jax: 0.10.0
libtpu: 0.0.40
codegen_flags: <defaults>
</compile_context>

<pallas_src>
import math
import numpy as np
import jax
import jax.numpy as jnp
from jax.experimental import pallas as pl
from jax.experimental.pallas import tpu as pltpu


# ----------------------------------------------------------------------------
# Glue: DCT filter construction (exact port of the PyTorch buffer init)
# ----------------------------------------------------------------------------
def get_freq_indices(method):
    assert method in ['top1', 'top2', 'top4', 'top8', 'top16', 'top32',
                      'bot1', 'bot2', 'bot4', 'bot8', 'bot16', 'bot32',
                      'low1', 'low2', 'low4', 'low8', 'low16', 'low32']
    num_freq = int(method[3:])
    if 'top' in method:
        all_x = [0, 0, 6, 0, 0, 1, 1, 4, 5, 1, 3, 0, 0, 0, 3, 2,
                 4, 6, 3, 5, 5, 2, 6, 5, 5, 3, 3, 4, 2, 2, 6, 1]
        all_y = [0, 1, 0, 5, 2, 0, 2, 0, 0, 6, 0, 4, 6, 3, 5, 2,
                 6, 3, 3, 3, 5, 1, 1, 2, 4, 2, 1, 1, 3, 0, 5, 3]
    elif 'low' in method:
        all_x = [0, 0, 1, 1, 0, 2, 2, 1, 2, 0, 3, 4, 0, 1, 3, 0,
                 1, 2, 3, 4, 5, 0, 1, 2, 3, 4, 5, 6, 1, 2, 3, 4]
        all_y = [0, 1, 0, 1, 2, 0, 1, 2, 2, 3, 0, 0, 4, 3, 1, 5,
                 4, 3, 2, 1, 0, 6, 5, 4, 3, 2, 1, 0, 6, 5, 4, 3]
    else:
        all_x = [6, 1, 3, 3, 2, 4, 1, 2, 4, 4, 5, 1, 4, 6, 2, 5,
                 6, 1, 6, 2, 2, 4, 3, 3, 5, 5, 6, 2, 5, 5, 3, 6]
        all_y = [6, 4, 4, 6, 6, 3, 1, 4, 4, 5, 6, 5, 2, 2, 5, 1,
                 4, 3, 5, 0, 3, 1, 1, 2, 4, 2, 1, 1, 5, 3, 3, 3]
    return all_x[:num_freq], all_y[:num_freq]


def _build_filter(pos, freq, POS):
    result = math.cos(math.pi * freq * (pos + 0.5) / POS) / math.sqrt(POS)
    return result if freq == 0 else result * math.sqrt(2)


def get_dct_filter(tile_x, tile_y, mapper_x, mapper_y, channel):
    dct = np.zeros((channel, tile_x, tile_y), dtype=np.float32)
    c_part = channel // len(mapper_x)
    for i, (u_x, v_y) in enumerate(zip(mapper_x, mapper_y)):
        for tx in range(tile_x):
            for ty in range(tile_y):
                dct[i * c_part:(i + 1) * c_part, tx, ty] = (
                    _build_filter(tx, u_x, tile_x) * _build_filter(ty, v_y, tile_y))
    return dct


def adaptive_pool_matrix(in_size, out_size):
    """P[i, h] = 1/len(bin_i) if h in bin_i else 0  (PyTorch adaptive_avg_pool bins)."""
    P = np.zeros((out_size, in_size), dtype=np.float32)
    for i in range(out_size):
        start = (i * in_size) // out_size
        end = -(-((i + 1) * in_size) // out_size)  # ceil
        P[i, start:end] = 1.0 / (end - start)
    return P


# ----------------------------------------------------------------------------
# Pallas kernel: NB batch elements per grid step, NCHW-native layout
# ----------------------------------------------------------------------------
def multi_attention_kernel(x_ref, m_ref, w1se_ref, w2se_ref, w1f_ref, w2f_ref, o_ref):
    x = x_ref[...]                                        # (NB, C, HW) f32
    inv_hw = 1.0 / float(x.shape[2])                      # always 1/(H*W)

    # One pass over x: SE global-avg-pool and (pre-scale) FCA reduction.
    pooled = jnp.sum(x, axis=2) * inv_hw                  # (NB, C)
    ym = jnp.sum(x * m_ref[...], axis=2)                  # (NB, C)  sum_hw(x * M)

    # SE head: Linear -> ReLU -> Linear -> Sigmoid
    h1 = jnp.maximum(
        jnp.dot(pooled, w1se_ref[...], preferred_element_type=jnp.float32), 0.0)
    z1 = jnp.dot(h1, w2se_ref[...], preferred_element_type=jnp.float32)
    s1 = pl.reciprocal(1.0 + jnp.exp(-z1))                # (NB, C)

    # FCA head, with s1 folded in: y = sum_hw(x1*M) = s1 * sum_hw(x*M)  (exact:
    # s1 is per-channel and constant over HW).
    y = s1 * ym                                           # (NB, C)
    h2 = jnp.maximum(
        jnp.dot(y, w1f_ref[...], preferred_element_type=jnp.float32), 0.0)
    z2 = jnp.dot(h2, w2f_ref[...], preferred_element_type=jnp.float32)
    s2 = pl.reciprocal(1.0 + jnp.exp(-z2))                # (NB, C)

    # Single write of x * (s1*s2); x1 is never materialized.
    scale = (s1 * s2)[:, :, None]                         # (NB, C, 1)
    o_ref[...] = (x * scale).astype(o_ref.dtype)


def multi_attention(x_nchw, m_c_hw, w1se, w2se, w1f, w2f, *, nb=8):
    """x_nchw: (N, C, H, W) f32; weights transposed to (in, out); m_c_hw: (C, H*W)."""
    N, C, H, W = x_nchw.shape
    HW = H * W
    R = w1se.shape[1]

    nb = min(nb, N)
    x_flat = x_nchw.reshape(N, C, HW)                     # free contiguous reshape
    pad = (-N) % nb
    if pad:
        x_flat = jnp.concatenate(
            [x_flat, jnp.zeros((pad, C, HW), x_flat.dtype)], axis=0)
    NP = N + pad

    out_flat = pl.pallas_call(
        multi_attention_kernel,
        out_shape=jax.ShapeDtypeStruct((NP, C, HW), jnp.float32),
        grid=(NP // nb,),
        in_specs=[
            pl.BlockSpec((nb, C, HW), lambda i: (i, 0, 0)),  # batched x slab
            pl.BlockSpec((C, HW), lambda i: (0, 0)),         # folded pool+DCT map
            pl.BlockSpec((C, R), lambda i: (0, 0)),          # SE fc1 (in,out)
            pl.BlockSpec((R, C), lambda i: (0, 0)),          # SE fc2
            pl.BlockSpec((C, R), lambda i: (0, 0)),          # FCA fc1
            pl.BlockSpec((R, C), lambda i: (0, 0)),          # FCA fc2
        ],
        out_specs=pl.BlockSpec((nb, C, HW), lambda i: (i, 0, 0)),
        compiler_params=pltpu.CompilerParams(
            dimension_semantics=("parallel",)),              # megacore shards batch blocks
    )(x_flat, m_c_hw, w1se, w2se, w1f, w2f)

    return out_flat[:N].reshape(N, C, H, W)


# ----------------------------------------------------------------------------
# Pure-JAX reference (mirrors the PyTorch forward)
# ----------------------------------------------------------------------------
def _sigmoid(z):
    return 1.0 / (1.0 + jnp.exp(-z))


def reference(x, dct_filter, P_h, P_w, w1se, w2se, w1f, w2f):
    pooled = jnp.mean(x, axis=(2, 3))                                        # (N, C)
    s1 = _sigmoid(jnp.maximum(pooled @ w1se, 0.0) @ w2se)
    x1 = x * s1[:, :, None, None]
    xp = jnp.einsum('nchw,ih,jw->ncij', x1, P_h, P_w)                        # adaptive pool
    y = jnp.sum(xp * dct_filter[None], axis=(2, 3))                          # DCT layer
    s2 = _sigmoid(jnp.maximum(y @ w1f, 0.0) @ w2f)
    return x1 * s2[:, :, None, None]


if __name__ == "__main__":
    # Channels must be a multiple of 16 (freq_sel='top16') and >= 16 (reduction=16).
    N, C, H, W = 8, 64, 14, 14
    R = C // 16
    dct_h = dct_w = 7

    # DCT buffer (freq_sel_method='top16', mapper scaled by dct_h//7 == 1)
    mx, my = get_freq_indices('top16')
    mx = [v * (dct_h // 7) for v in mx]
    my = [v * (dct_w // 7) for v in my]
    dct_filter = get_dct_filter(dct_h, dct_w, mx, my, C)        # (C, 7, 7)

    # Fold adaptive_avg_pool2d((H,W)->(7,7)) + DCT weighting into one spatial map.
    P_h = adaptive_pool_matrix(H, dct_h)                        # (7, H)
    P_w = adaptive_pool_matrix(W, dct_w)                        # (7, W)
    M = np.einsum('cij,ih,jw->chw', dct_filter, P_h, P_w)       # (C, H, W)
    M_c_hw = jnp.asarray(M.reshape(C, H * W))                   # (C, HW) — matches kernel layout

    # Deterministic parameter init (nn.Linear weights, stored as (in, out)).
    key = jax.random.PRNGKey(0)
    k1, k2, k3, k4, kx = jax.random.split(key, 5)
    w1se = jax.random.normal(k1, (C, R), dtype=jnp.float32) * 0.2
    w2se = jax.random.normal(k2, (R, C), dtype=jnp.float32) * 0.2
    w1f = jax.random.normal(k3, (C, R), dtype=jnp.float32) * 0.2
    w2f = jax.random.normal(k4, (R, C), dtype=jnp.float32) * 0.2

    x = jax.random.normal(kx, (N, C, H, W), dtype=jnp.float32)

    # nb=4 -> grid=(2,): at least 2 parallel grid steps for v7x's two TensorCores.
    out = multi_attention(x, M_c_hw, w1se, w2se, w1f, w2f, nb=4)
    out = jax.block_until_ready(out)

    ref = reference(x, jnp.asarray(dct_filter), jnp.asarray(P_h), jnp.asarray(P_w),
                    w1se, w2se, w1f, w2f)
    np.testing.assert_allclose(np.asarray(out), np.asarray(ref), rtol=1e-3, atol=1e-3)

    print("KERNEL_OK")
</pallas_src>

<mosaic_0001>
module attributes {stable_mosaic.version = 11 : i64} {
  func.func @multi_attention_kernel(%arg0: i32, %arg1: memref<4x64x196xf32, #tpu.memory_space<vmem>>, %arg2: memref<64x196xf32, #tpu.memory_space<vmem>>, %arg3: memref<64x4xf32, #tpu.memory_space<vmem>>, %arg4: memref<4x64xf32, #tpu.memory_space<vmem>>, %arg5: memref<64x4xf32, #tpu.memory_space<vmem>>, %arg6: memref<4x64xf32, #tpu.memory_space<vmem>>, %arg7: memref<4x64x196xf32, #tpu.memory_space<vmem>>) attributes {dimension_semantics = [#tpu.dimension_semantics<parallel>], iteration_bounds = array<i64: 2>, scalar_prefetch = 0 : i64, scratch_operands = 0 : i64, tpu.core_type = #tpu.core_type<tc>, window_params = [{transform_indices = @transform_0, window_bounds = array<i64: 4, 64, 196>}, {pipeline_mode = #tpu.pipeline_mode<synchronous>, transform_indices = @transform_1, window_bounds = array<i64: 64, 196>}, {pipeline_mode = #tpu.pipeline_mode<synchronous>, transform_indices = @transform_2, window_bounds = array<i64: 64, 4>}, {pipeline_mode = #tpu.pipeline_mode<synchronous>, transform_indices = @transform_3, window_bounds = array<i64: 4, 64>}, {pipeline_mode = #tpu.pipeline_mode<synchronous>, transform_indices = @transform_4, window_bounds = array<i64: 64, 4>}, {pipeline_mode = #tpu.pipeline_mode<synchronous>, transform_indices = @transform_5, window_bounds = array<i64: 4, 64>}, {transform_indices = @transform_6, window_bounds = array<i64: 4, 64, 196>}]} {
    %c0 = arith.constant 0 : index
    %c0_0 = arith.constant 0 : index
    %c0_1 = arith.constant 0 : index
    %0 = vector.load %arg1[%c0, %c0_0, %c0_1] : memref<4x64x196xf32, #tpu.memory_space<vmem>>, vector<4x64x196xf32>
    %cst = arith.constant dense<0.000000e+00> : vector<4x64xf32>
    %1 = vector.multi_reduction <add>, %0, %cst [2] : vector<4x64x196xf32> to vector<4x64xf32>
    %cst_2 = arith.constant 0.00510204071 : f32
    %2 = vector.broadcast %cst_2 : f32 to vector<4x64xf32>
    %3 = arith.mulf %1, %2 : vector<4x64xf32>
    %c0_3 = arith.constant 0 : index
    %c0_4 = arith.constant 0 : index
    %4 = vector.load %arg2[%c0_3, %c0_4] : memref<64x196xf32, #tpu.memory_space<vmem>>, vector<64x196xf32>
    %5 = vector.shape_cast %4 : vector<64x196xf32> to vector<1x64x196xf32>
    %6 = vector.broadcast %5 : vector<1x64x196xf32> to vector<4x64x196xf32>
    %7 = arith.mulf %0, %6 : vector<4x64x196xf32>
    %cst_5 = arith.constant dense<0.000000e+00> : vector<4x64xf32>
    %8 = vector.multi_reduction <add>, %7, %cst_5 [2] : vector<4x64x196xf32> to vector<4x64xf32>
    %c0_6 = arith.constant 0 : index
    %c0_7 = arith.constant 0 : index
    %9 = vector.load %arg3[%c0_6, %c0_7] : memref<64x4xf32, #tpu.memory_space<vmem>>, vector<64x4xf32>
    %cst_8 = arith.constant dense<0.000000e+00> : vector<4x4xf32>
    %10 = tpu.matmul %3, %9, %cst_8 {dimension_numbers = #tpu.dot_dimension_numbers<[1], [0], [0], [1], [0, 0, 1, 1], [], []>} : vector<4x64xf32>, vector<64x4xf32>, vector<4x4xf32> -> vector<4x4xf32>
    %cst_9 = arith.constant 0.000000e+00 : f32
    %11 = vector.broadcast %cst_9 : f32 to vector<4x4xf32>
    %12 = arith.maximumf %10, %11 : vector<4x4xf32>
    %c0_10 = arith.constant 0 : index
    %c0_11 = arith.constant 0 : index
    %13 = vector.load %arg4[%c0_10, %c0_11] : memref<4x64xf32, #tpu.memory_space<vmem>>, vector<4x64xf32>
    %cst_12 = arith.constant dense<0.000000e+00> : vector<4x64xf32>
    %14 = tpu.matmul %12, %13, %cst_12 {dimension_numbers = #tpu.dot_dimension_numbers<[1], [0], [0], [1], [0, 0, 1, 1], [], []>} : vector<4x4xf32>, vector<4x64xf32>, vector<4x64xf32> -> vector<4x64xf32>
    %cst_13 = arith.constant 0.000000e+00 : f32
    %15 = vector.broadcast %cst_13 : f32 to vector<4x64xf32>
    %16 = arith.subf %15, %14 : vector<4x64xf32>
    %17 = math.exp %16 : vector<4x64xf32>
    %cst_14 = arith.constant 1.000000e+00 : f32
    %18 = vector.broadcast %cst_14 : f32 to vector<4x64xf32>
    %19 = arith.addf %18, %17 : vector<4x64xf32>
    %20 = tpu.reciprocal %19 : vector<4x64xf32> -> vector<4x64xf32>
    %21 = arith.mulf %20, %8 : vector<4x64xf32>
    %c0_15 = arith.constant 0 : index
    %c0_16 = arith.constant 0 : index
    %22 = vector.load %arg5[%c0_15, %c0_16] : memref<64x4xf32, #tpu.memory_space<vmem>>, vector<64x4xf32>
    %cst_17 = arith.constant dense<0.000000e+00> : vector<4x4xf32>
    %23 = tpu.matmul %21, %22, %cst_17 {dimension_numbers = #tpu.dot_dimension_numbers<[1], [0], [0], [1], [0, 0, 1, 1], [], []>} : vector<4x64xf32>, vector<64x4xf32>, vector<4x4xf32> -> vector<4x4xf32>
    %cst_18 = arith.constant 0.000000e+00 : f32
    %24 = vector.broadcast %cst_18 : f32 to vector<4x4xf32>
    %25 = arith.maximumf %23, %24 : vector<4x4xf32>
    %c0_19 = arith.constant 0 : index
    %c0_20 = arith.constant 0 : index
    %26 = vector.load %arg6[%c0_19, %c0_20] : memref<4x64xf32, #tpu.memory_space<vmem>>, vector<4x64xf32>
    %cst_21 = arith.constant dense<0.000000e+00> : vector<4x64xf32>
    %27 = tpu.matmul %25, %26, %cst_21 {dimension_numbers = #tpu.dot_dimension_numbers<[1], [0], [0], [1], [0, 0, 1, 1], [], []>} : vector<4x4xf32>, vector<4x64xf32>, vector<4x64xf32> -> vector<4x64xf32>
    %cst_22 = arith.constant 0.000000e+00 : f32
    %28 = vector.broadcast %cst_22 : f32 to vector<4x64xf32>
    %29 = arith.subf %28, %27 : vector<4x64xf32>
    %30 = math.exp %29 : vector<4x64xf32>
    %cst_23 = arith.constant 1.000000e+00 : f32
    %31 = vector.broadcast %cst_23 : f32 to vector<4x64xf32>
    %32 = arith.addf %31, %30 : vector<4x64xf32>
    %33 = tpu.reciprocal %32 : vector<4x64xf32> -> vector<4x64xf32>
    %34 = arith.mulf %20, %33 : vector<4x64xf32>
    %35 = vector.shape_cast %34 : vector<4x64xf32> to vector<4x64x1xf32>
    %36 = vector.broadcast %35 : vector<4x64x1xf32> to vector<4x64x196xf32>
    %37 = arith.mulf %0, %36 : vector<4x64x196xf32>
    %c0_24 = arith.constant 0 : index
    %c0_25 = arith.constant 0 : index
    %c0_26 = arith.constant 0 : index
    %38 = vector.load %arg7[%c0_24, %c0_25, %c0_26] : memref<4x64x196xf32, #tpu.memory_space<vmem>>, vector<4x64x196xf32>
    tpu.vector_store %arg7[%c0_24, %c0_25, %c0_26], %37 {strides = array<i32>} : memref<4x64x196xf32, #tpu.memory_space<vmem>>, vector<4x64x196xf32>,
    return
  }
  func.func @transform_0(%arg0: i32) -> (i32, i32, i32) {
    %c0_i32 = arith.constant 0 : i32
    %c0_i32_0 = arith.constant 0 : i32
    %c0_i32_1 = arith.constant 0 : i32
    return %arg0, %c0_i32, %c0_i32_0 : i32, i32, i32
  }
  func.func @transform_1(%arg0: i32) -> (i32, i32) {
    %c0_i32 = arith.constant 0 : i32
    %c0_i32_0 = arith.constant 0 : i32
    %c0_i32_1 = arith.constant 0 : i32
    return %c0_i32, %c0_i32_0 : i32, i32
  }
  func.func @transform_2(%arg0: i32) -> (i32, i32) {
    %c0_i32 = arith.constant 0 : i32
    %c0_i32_0 = arith.constant 0 : i32
    %c0_i32_1 = arith.constant 0 : i32
    return %c0_i32, %c0_i32_0 : i32, i32
  }
  func.func @transform_3(%arg0: i32) -> (i32, i32) {
    %c0_i32 = arith.constant 0 : i32
    %c0_i32_0 = arith.constant 0 : i32
    %c0_i32_1 = arith.constant 0 : i32
    return %c0_i32, %c0_i32_0 : i32, i32
  }
  func.func @transform_4(%arg0: i32) -> (i32, i32) {
    %c0_i32 = arith.constant 0 : i32
    %c0_i32_0 = arith.constant 0 : i32
    %c0_i32_1 = arith.constant 0 : i32
    return %c0_i32, %c0_i32_0 : i32, i32
  }
  func.func @transform_5(%arg0: i32) -> (i32, i32) {
    %c0_i32 = arith.constant 0 : i32
    %c0_i32_0 = arith.constant 0 : i32
    %c0_i32_1 = arith.constant 0 : i32
    return %c0_i32, %c0_i32_0 : i32, i32
  }
  func.func @transform_6(%arg0: i32) -> (i32, i32, i32) {
    %c0_i32 = arith.constant 0 : i32
    %c0_i32_0 = arith.constant 0 : i32
    %c0_i32_1 = arith.constant 0 : i32
    return %arg0, %c0_i32, %c0_i32_0 : i32, i32, i32
  }
}

</mosaic_0001>

<llo_original>
// kernel: tpu_custom_call.1
$region0: #{tpu_custom_call.1}
  #allocation0 [shape = 'u32[]', space=smem, size = 0x4, offset = 0x4, fixed_abs, tag = 'smem constant byte address 0x4 - core index']
  #allocation1 [shape = 'u32[144,128]{1,0:T(1,128)}', space=vmem, size = 0x12000, scoped, tag = 'internal scratch']
  %s0 = inlined_call_operand.hbm [shape: f32[8,64,196], index: 0, kind: input, shape index: {}]
  %s1 = inlined_call_operand.vmem [shape: f32[64,196], index: 1, kind: input, shape index: {}]
  %s2 = inlined_call_operand.vmem [shape: f32[64,4], index: 2, kind: input, shape index: {}]
  %s3 = inlined_call_operand.vmem [shape: f32[4,64], index: 3, kind: input, shape index: {}]
  %s4 = inlined_call_operand.vmem [shape: f32[64,4], index: 4, kind: input, shape index: {}]
  %s5 = inlined_call_operand.vmem [shape: f32[4,64], index: 5, kind: input, shape index: {}]
  %s6 = inlined_call_operand.hbm [shape: f32[8,64,196], index: 6, kind: output, shape index: {}]
  %s7 = sld [smem:[#allocation0]]
  $region61: #{tpu_custom_call.1} parent=0
    _
  %s9 = ssub.s32 1, %s7
  %s10 = scalar_select 0, %s9, %s7
  $region1: #{tpu_custom_call.1} parent=0
    #allocation2 [shape = 'u8[524288]{0}', space=vmem, size = 0x80000, scoped, tag = 'input window, operand 0']
    #allocation3 [shape = 's32[2]{0}', space=sflag, size = 0x8, scoped, tag = 'scoped memory for tpu_custom_call.1']
    #allocation4 [shape = 's32[2]{0}', space=sflag, size = 0x8, scoped, tag = 'scoped memory for tpu_custom_call.1']
    #allocation5 [shape = 'u8[524288]{0}', space=vmem, size = 0x80000, scoped, tag = 'output window, operand 0']
    %11 = vsyncpa [#allocation3], 0
    %s12 = scalar_lea.sflag [#allocation3], 1
    %13 = vsyncpa %s12, 0
    %14 = vsyncpa [#allocation4], 0
    %s15 = scalar_lea.sflag [#allocation4], 1
    %16 = vsyncpa %s15, 0
    loop: start=0, step=1, limit=4
    $region2: #{tpu_custom_call.1} parent=1 // loop_pre_header
      _
    $region3: #{tpu_custom_call.1} parent=1 // loop_header
      %s18 = sphi 0, %s22
      %p19 = scmp.ge.s32.totalorder %s18, 4
      %s28 = sphi 0, %s30
      %s31 = sphi 0, %s28
      %s32 = sphi 0, %s31
      %s48 = sphi 0, %s32
      %s52 = sphi 0, %s52
      %s54 = sphi 0, %s52
      %s55 = sphi 0, %s54
      %s69 = sphi 0, %s55
      %s73 = sphi 0, %s73
      %s75 = sphi 0, %s73
      %s76 = sphi 0, %s75
      %s90 = sphi 0, %s76
      %s94 = sphi 0, %s94
      %s96 = sphi 0, %s94
      %s97 = sphi 0, %s96
      %s111 = sphi 0, %s97
      %s115 = sphi 0, %s115
      %s117 = sphi 0, %s115
      %s118 = sphi 0, %s117
      %s132 = sphi 0, %s118
      %s136 = sphi 0, %s136
      %s138 = sphi 0, %s136
      %s139 = sphi 0, %s138
      %s153 = sphi 0, %s139
      %s159 = sphi 0, %s161
      %s162 = sphi 0, %s159
      %s163 = sphi 0, %s162
      %s179 = sphi 0, %s163
    $region4: #{tpu_custom_call.1} parent=1 // loop_header_branch
      %21 = sbr.rel (%p19) target = $region8
    $region5: #{tpu_custom_call.1} parent=1 // loop_body
      %s23 = ssub.s32 %s18, 1
      %s24 = ssub.s32 %s18, 2
      %s25 = sadd.s32 %s18, 1
      %s26 = ssub.s32 %s18, %s25
      %p27 = scmp.eq.s32.totalorder %s26, 0
      %s29 = sadd.s32 %s28, 1
      %s30 = scalar_select %p27, %s28, %s29
      %p33 = pneg %p27
      %p34 = scmp.eq.s32.totalorder %s18, 1
      %p35 = por %p33, %p34
      %p36 = scmp.ne.s32.totalorder %s28, %s31
      %p37 = scmp.eq.s32.totalorder %s18, 0
      %p38 = por %p36, %p37
      %p39 = scmp.ne.s32.totalorder %s28, %s31
      %p40 = scmp.eq.s32.totalorder %s23, 1
      %p41 = por %p39, %p40
      %p42 = scmp.ne.s32.totalorder %s31, %s32
      %p43 = scmp.eq.s32.totalorder %s23, 0
      %p44 = por %p42, %p43
      %p45 = scmp.ne.s32.totalorder %s31, %s32
      %p46 = scmp.eq.s32.totalorder %s24, 1
      %p47 = por %p45, %p46
      %p49 = scmp.ne.s32.totalorder %s32, %s48
      %p50 = scmp.eq.s32.totalorder %s24, 0
      %p51 = por %p49, %p50
      %s53 = sadd.s32 %s52, 1
      %p56 = scmp.eq.s32.totalorder %s18, 1
      %p57 = scmp.ne.s32.totalorder %s52, %s54
      %p58 = scmp.eq.s32.totalorder %s18, 0
      %p59 = por %p57, %p58
      %p60 = scmp.ne.s32.totalorder %s52, %s54
      %p61 = scmp.eq.s32.totalorder %s23, 1
      %p62 = por %p60, %p61
      %p63 = scmp.ne.s32.totalorder %s54, %s55
      %p64 = scmp.eq.s32.totalorder %s23, 0
      %p65 = por %p63, %p64
      %p66 = scmp.ne.s32.totalorder %s54, %s55
      %p67 = scmp.eq.s32.totalorder %s24, 1
      %p68 = por %p66, %p67
      %p70 = scmp.ne.s32.totalorder %s55, %s69
      %p71 = scmp.eq.s32.totalorder %s24, 0
      %p72 = por %p70, %p71
      %s74 = sadd.s32 %s73, 1
      %p77 = scmp.eq.s32.totalorder %s18, 1
      %p78 = scmp.ne.s32.totalorder %s73, %s75
      %p79 = scmp.eq.s32.totalorder %s18, 0
      %p80 = por %p78, %p79
      %p81 = scmp.ne.s32.totalorder %s73, %s75
      %p82 = scmp.eq.s32.totalorder %s23, 1
      %p83 = por %p81, %p82
      %p84 = scmp.ne.s32.totalorder %s75, %s76
      %p85 = scmp.eq.s32.totalorder %s23, 0
      %p86 = por %p84, %p85
      %p87 = scmp.ne.s32.totalorder %s75, %s76
      %p88 = scmp.eq.s32.totalorder %s24, 1
      %p89 = por %p87, %p88
      %p91 = scmp.ne.s32.totalorder %s76, %s90
      %p92 = scmp.eq.s32.totalorder %s24, 0
      %p93 = por %p91, %p92
      %s95 = sadd.s32 %s94, 1
      %p98 = scmp.eq.s32.totalorder %s18, 1
      %p99 = scmp.ne.s32.totalorder %s94, %s96
      %p100 = scmp.eq.s32.totalorder %s18, 0
      %p101 = por %p99, %p100
      %p102 = scmp.ne.s32.totalorder %s94, %s96
      %p103 = scmp.eq.s32.totalorder %s23, 1
      %p104 = por %p102, %p103
      %p105 = scmp.ne.s32.totalorder %s96, %s97
      %p106 = scmp.eq.s32.totalorder %s23, 0
      %p107 = por %p105, %p106
      %p108 = scmp.ne.s32.totalorder %s96, %s97
      %p109 = scmp.eq.s32.totalorder %s24, 1
      %p110 = por %p108, %p109
      %p112 = scmp.ne.s32.totalorder %s97, %s111
      %p113 = scmp.eq.s32.totalorder %s24, 0
      %p114 = por %p112, %p113
      %s116 = sadd.s32 %s115, 1
      %p119 = scmp.eq.s32.totalorder %s18, 1
      %p120 = scmp.ne.s32.totalorder %s115, %s117
      %p121 = scmp.eq.s32.totalorder %s18, 0
      %p122 = por %p120, %p121
      %p123 = scmp.ne.s32.totalorder %s115, %s117
      %p124 = scmp.eq.s32.totalorder %s23, 1
      %p125 = por %p123, %p124
      %p126 = scmp.ne.s32.totalorder %s117, %s118
      %p127 = scmp.eq.s32.totalorder %s23, 0
      %p128 = por %p126, %p127
      %p129 = scmp.ne.s32.totalorder %s117, %s118
      %p130 = scmp.eq.s32.totalorder %s24, 1
      %p131 = por %p129, %p130
      %p133 = scmp.ne.s32.totalorder %s118, %s132
      %p134 = scmp.eq.s32.totalorder %s24, 0
      %p135 = por %p133, %p134
      %s137 = sadd.s32 %s136, 1
      %p140 = scmp.eq.s32.totalorder %s18, 1
      %p141 = scmp.ne.s32.totalorder %s136, %s138
      %p142 = scmp.eq.s32.totalorder %s18, 0
      %p143 = por %p141, %p142
      %p144 = scmp.ne.s32.totalorder %s136, %s138
      %p145 = scmp.eq.s32.totalorder %s23, 1
      %p146 = por %p144, %p145
      %p147 = scmp.ne.s32.totalorder %s138, %s139
      %p148 = scmp.eq.s32.totalorder %s23, 0
      %p149 = por %p147, %p148
      %p150 = scmp.ne.s32.totalorder %s138, %s139
      %p151 = scmp.eq.s32.totalorder %s24, 1
      %p152 = por %p150, %p151
      %p154 = scmp.ne.s32.totalorder %s139, %s153
      %p155 = scmp.eq.s32.totalorder %s24, 0
      %p156 = por %p154, %p155
      %s157 = ssub.s32 %s18, %s25
      %p158 = scmp.eq.s32.totalorder %s157, 0
      %s160 = sadd.s32 %s159, 1
      %s161 = scalar_select %p158, %s159, %s160
      %p164 = pneg %p158
      %p165 = scmp.eq.s32.totalorder %s18, 1
      %p166 = por %p164, %p165
      %p167 = scmp.ne.s32.totalorder %s159, %s162
      %p168 = scmp.eq.s32.totalorder %s18, 0
      %p169 = por %p167, %p168
      %p170 = scmp.ne.s32.totalorder %s159, %s162
      %p171 = scmp.eq.s32.totalorder %s23, 1
      %p172 = por %p170, %p171
      %p173 = scmp.ne.s32.totalorder %s162, %s163
      %p174 = scmp.eq.s32.totalorder %s23, 0
      %p175 = por %p173, %p174
      %p176 = scmp.ne.s32.totalorder %s162, %s163
      %p177 = scmp.eq.s32.totalorder %s24, 1
      %p178 = por %p176, %p177
      %p180 = scmp.ne.s32.totalorder %s163, %s179
      %p181 = scmp.eq.s32.totalorder %s24, 0
      %p182 = por %p180, %p181
      %p183 = scmp.le.s32.totalorder 1, %s18
      %p184 = scmp.lt.s32.totalorder %s18, 3
      %p185 = pnand %p183, %p184
      %p186 = pneg %p185
      // Predicated region
      $region9: #{tpu_custom_call.1} parent=5 // pred_check
        _
      $region10: #{tpu_custom_call.1} parent=5 // pred_check_branch
        %188 = sbr.rel (%p185) target = $region12
      $region11: #{tpu_custom_call.1} parent=5 // pred_region
        %s189 = ssub.s32 %s18, 1
        // Predicated region
        $region13: #{tpu_custom_call.1} parent=11 // pred_check
          %p190 = pneg %p65
        $region14: #{tpu_custom_call.1} parent=11 // pred_check_branch
          %192 = sbr.rel (%p190) target = $region16
        $region15: #{tpu_custom_call.1} parent=11 // pred_region
          _
        $region16: #{tpu_custom_call.1} parent=11 // pred_fallthru
          _
        // Predicated region
        $region17: #{tpu_custom_call.1} parent=11 // pred_check
          %p193 = pneg %p86
        $region18: #{tpu_custom_call.1} parent=11 // pred_check_branch
          %195 = sbr.rel (%p193) target = $region20
        $region19: #{tpu_custom_call.1} parent=11 // pred_region
          _
        $region20: #{tpu_custom_call.1} parent=11 // pred_fallthru
          _
        // Predicated region
        $region21: #{tpu_custom_call.1} parent=11 // pred_check
          %p196 = pneg %p107
        $region22: #{tpu_custom_call.1} parent=11 // pred_check_branch
          %198 = sbr.rel (%p196) target = $region24
        $region23: #{tpu_custom_call.1} parent=11 // pred_region
          _
        $region24: #{tpu_custom_call.1} parent=11 // pred_fallthru
          _
        // Predicated region
        $region25: #{tpu_custom_call.1} parent=11 // pred_check
          %p199 = pneg %p128
        $region26: #{tpu_custom_call.1} parent=11 // pred_check_branch
          %201 = sbr.rel (%p199) target = $region28
        $region27: #{tpu_custom_call.1} parent=11 // pred_region
          _
        $region28: #{tpu_custom_call.1} parent=11 // pred_fallthru
          _
        // Predicated region
        $region29: #{tpu_custom_call.1} parent=11 // pred_check
          %p202 = pneg %p149
        $region30: #{tpu_custom_call.1} parent=11 // pred_check_branch
          %204 = sbr.rel (%p202) target = $region32
        $region31: #{tpu_custom_call.1} parent=11 // pred_region
          _
        $region32: #{tpu_custom_call.1} parent=11 // pred_fallthru
          _
      $region12: #{tpu_custom_call.1} parent=5 // pred_fallthru
        _
      %p205 = scmp.lt.s32.totalorder %s18, 2
      // Predicated region
      $region33: #{tpu_custom_call.1} parent=5 // pred_check
        %p206 = pneg %p205
      $region34: #{tpu_custom_call.1} parent=5 // pred_check_branch
        %208 = sbr.rel (%p206) target = $region36
      $region35: #{tpu_custom_call.1} parent=5 // pred_region
        // Predicated region
        $region37: #{tpu_custom_call.1} parent=35 // pred_check
          %p209 = pneg %p38
        $region38: #{tpu_custom_call.1} parent=35 // pred_check_branch
          %211 = sbr.rel (%p209) target = $region40
        $region39: #{tpu_custom_call.1} parent=35 // pred_region
          %s212 = sand.u32 %s28, 1
          %s213 = scalar_lea.sflag [#allocation3], %s212
          %s214 = sand.u32 %s28, 1
          %s215 = smul.addr %s214, 512
          %s216 = scalar_lea.vmem [#allocation2], %s215
          %s217 = smul.u32 4, %s18
          %s219 = ssub.s32 8192, 8192
          %220 = vsyncadd %s213, %s219
          %s221 = smul.addr %s217, 16
          %s222 = smul.addr %s221, 128
          %s223 = scalar_lea.hbm %s0, %s222
          %s224 = sshll.u32 %s216, 4
          %s225 = int_to_ptr.vmem [resolvable:$true] %s224
          %230 = dma.hbm_to_vmem [thread:$0]  %s223, 8192, %s225, %s213, 256, 256, 16
        $region40: #{tpu_custom_call.1} parent=35 // pred_fallthru
          _
      $region36: #{tpu_custom_call.1} parent=5 // pred_fallthru
        _
      %p231 = scmp.le.s32.totalorder 1, %s18
      %p232 = scmp.lt.s32.totalorder %s18, 3
      %p233 = pnand %p231, %p232
      %p234 = pneg %p233
      // Predicated region
      $region41: #{tpu_custom_call.1} parent=5 // pred_check
        _
      $region42: #{tpu_custom_call.1} parent=5 // pred_check_branch
        %236 = sbr.rel (%p233) target = $region44
      $region43: #{tpu_custom_call.1} parent=5 // pred_region
        %s237 = ssub.s32 %s18, 1
        %s238 = sand.u32 %s31, 1
        %s239 = scalar_lea.sflag [#allocation3], %s238
        %s240 = sand.u32 %s31, 1
        %s241 = smul.addr %s240, 512
        %s242 = scalar_lea.vmem [#allocation2], %s241
        // Predicated region
        $region45: #{tpu_custom_call.1} parent=43 // pred_check
          %p243 = pneg %p44
        $region46: #{tpu_custom_call.1} parent=43 // pred_check_branch
          %245 = sbr.rel (%p243) target = $region48
        $region47: #{tpu_custom_call.1} parent=43 // pred_region
          %246 = dma.done %s239, 8192
        $region48: #{tpu_custom_call.1} parent=43 // pred_fallthru
          _
        %s247 = sand.u32 %s31, 1
        %s248 = scalar_lea.sflag [#allocation3], %s247
        %s249 = sand.u32 %s31, 1
        %s250 = smul.addr %s249, 512
        %s251 = scalar_lea.vmem [#allocation2], %s250
        %p252 = pneg %p44
        %p253 = pneg %p41
        %p254 = pneg %p65
        %p255 = pneg %p62
        %p256 = pneg %p86
        %p257 = pneg %p83
        %p258 = pneg %p107
        %p259 = pneg %p104
        %p260 = pneg %p128
        %p261 = pneg %p125
        %p262 = pneg %p149
        %p263 = pneg %p146
        %p264 = pneg %p175
        %p265 = pneg %p172
        %s266 = sand.u32 %s162, 1
        %s267 = scalar_lea.sflag [#allocation4], %s266
        %s268 = sand.u32 %s162, 1
        %s269 = smul.addr %s268, 512
        %s270 = scalar_lea.vmem [#allocation5], %s269
        %s271 = smul.u32 4, %s23
        %s272 = smul.u32 4, %s23
        %v273 = vld [vmem:[%s242] sm:$0xff]
        %v274 = vld [vmem:[%s242 + $0x8] sm:$0xff]
        %v275 = vld [vmem:[%s242 + $0x10] sm:$0xff]
        %v276 = vld [vmem:[%s242 + $0x18] sm:$0xff]
        %v277 = vld [vmem:[%s242 + $0x20] sm:$0xff]
        %v278 = vld [vmem:[%s242 + $0x28] sm:$0xff]
        %v279 = vld [vmem:[%s242 + $0x30] sm:$0xff]
        %v280 = vld [vmem:[%s242 + $0x38] sm:$0xff]
        %v281 = vld [vmem:[%s242 + $0x40] sm:$0xff]
        %v282 = vld [vmem:[%s242 + $0x48] sm:$0xff]
        %v283 = vld [vmem:[%s242 + $0x50] sm:$0xff]
        %v284 = vld [vmem:[%s242 + $0x58] sm:$0xff]
        %v285 = vld [vmem:[%s242 + $0x60] sm:$0xff]
        %v286 = vld [vmem:[%s242 + $0x68] sm:$0xff]
        %v287 = vld [vmem:[%s242 + $0x70] sm:$0xff]
        %v288 = vld [vmem:[%s242 + $0x78] sm:$0xff]
        %v289 = vld [vmem:[%s242 + $0x80] sm:$0xff]
        %v290 = vld [vmem:[%s242 + $0x88] sm:$0xff]
        %v291 = vld [vmem:[%s242 + $0x90] sm:$0xff]
        %v292 = vld [vmem:[%s242 + $0x98] sm:$0xff]
        %v293 = vld [vmem:[%s242 + $0xa0] sm:$0xff]
        %v294 = vld [vmem:[%s242 + $0xa8] sm:$0xff]
        %v295 = vld [vmem:[%s242 + $0xb0] sm:$0xff]
        %v296 = vld [vmem:[%s242 + $0xb8] sm:$0xff]
        %v297 = vld [vmem:[%s242 + $0xc0] sm:$0xff]
        %v298 = vld [vmem:[%s242 + $0xc8] sm:$0xff]
        %v299 = vld [vmem:[%s242 + $0xd0] sm:$0xff]
        %v300 = vld [vmem:[%s242 + $0xd8] sm:$0xff]
        %v301 = vld [vmem:[%s242 + $0xe0] sm:$0xff]
        %v302 = vld [vmem:[%s242 + $0xe8] sm:$0xff]
        %v303 = vld [vmem:[%s242 + $0xf0] sm:$0xff]
        %v304 = vld [vmem:[%s242 + $0xf8] sm:$0xff]
        %v305 = vld [vmem:[%s242 + $0x100] sm:$0xff]
        %v306 = vld [vmem:[%s242 + $0x108] sm:$0xff]
        %v307 = vld [vmem:[%s242 + $0x110] sm:$0xff]
        %v308 = vld [vmem:[%s242 + $0x118] sm:$0xff]
        %v309 = vld [vmem:[%s242 + $0x120] sm:$0xff]
        %v310 = vld [vmem:[%s242 + $0x128] sm:$0xff]
        %v311 = vld [vmem:[%s242 + $0x130] sm:$0xff]
        %v312 = vld [vmem:[%s242 + $0x138] sm:$0xff]
        %v313 = vld [vmem:[%s242 + $0x140] sm:$0xff]
        %v314 = vld [vmem:[%s242 + $0x148] sm:$0xff]
        %v315 = vld [vmem:[%s242 + $0x150] sm:$0xff]
        %v316 = vld [vmem:[%s242 + $0x158] sm:$0xff]
        %v317 = vld [vmem:[%s242 + $0x160] sm:$0xff]
        %v318 = vld [vmem:[%s242 + $0x168] sm:$0xff]
        %v319 = vld [vmem:[%s242 + $0x170] sm:$0xff]
        %v320 = vld [vmem:[%s242 + $0x178] sm:$0xff]
        %v321 = vld [vmem:[%s242 + $0x180] sm:$0xff]
        %v322 = vld [vmem:[%s242 + $0x188] sm:$0xff]
        %v323 = vld [vmem:[%s242 + $0x190] sm:$0xff]
        %v324 = vld [vmem:[%s242 + $0x198] sm:$0xff]
        %v325 = vld [vmem:[%s242 + $0x1a0] sm:$0xff]
        %v326 = vld [vmem:[%s242 + $0x1a8] sm:$0xff]
        %v327 = vld [vmem:[%s242 + $0x1b0] sm:$0xff]
        %v328 = vld [vmem:[%s242 + $0x1b8] sm:$0xff]
        %v329 = vld [vmem:[%s242 + $0x1c0] sm:$0xff]
        %v330 = vld [vmem:[%s242 + $0x1c8] sm:$0xff]
        %v331 = vld [vmem:[%s242 + $0x1d0] sm:$0xff]
        %v332 = vld [vmem:[%s242 + $0x1d8] sm:$0xff]
        %v333 = vld [vmem:[%s242 + $0x1e0] sm:$0xff]
        %v334 = vld [vmem:[%s242 + $0x1e8] sm:$0xff]
        %v335 = vld [vmem:[%s242 + $0x1f0] sm:$0xff]
        %v336 = vld [vmem:[%s242 + $0x1f8] sm:$0xff]
        %vm337 = vcmask 556032
        %v338 = vsel %vm337, %v274, 0.0
        %v339 = vadd.f32 %v273, %v338
        %340 = vadd.xlane.f32.xlu0 %v339
        %v341 = vpop.xlane.xlu0 %340
        %v342 = vsel %vm337, %v276, 0.0
        %v343 = vadd.f32 %v275, %v342
        %344 = vadd.xlane.f32.xlu0 %v343
        %v345 = vpop.xlane.xlu0 %344
        %v346 = vsel %vm337, %v278, 0.0
        %v347 = vadd.f32 %v277, %v346
        %348 = vadd.xlane.f32.xlu0 %v347
        %v349 = vpop.xlane.xlu0 %348
        %v350 = vsel %vm337, %v280, 0.0
        %v351 = vadd.f32 %v279, %v350
        %352 = vadd.xlane.f32.xlu0 %v351
        %v353 = vpop.xlane.xlu0 %352
        %v354 = vsel %vm337, %v282, 0.0
        %v355 = vadd.f32 %v281, %v354
        %356 = vadd.xlane.f32.xlu0 %v355
        %v357 = vpop.xlane.xlu0 %356
        %v358 = vsel %vm337, %v284, 0.0
        %v359 = vadd.f32 %v283, %v358
        %360 = vadd.xlane.f32.xlu0 %v359
        %v361 = vpop.xlane.xlu0 %360
        %v362 = vsel %vm337, %v286, 0.0
        %v363 = vadd.f32 %v285, %v362
        %364 = vadd.xlane.f32.xlu0 %v363
        %v365 = vpop.xlane.xlu0 %364
        %v366 = vsel %vm337, %v288, 0.0
        %v367 = vadd.f32 %v287, %v366
        %368 = vadd.xlane.f32.xlu0 %v367
        %v369 = vpop.xlane.xlu0 %368
        %v370 = vsel %vm337, %v290, 0.0
        %v371 = vadd.f32 %v289, %v370
        %372 = vadd.xlane.f32.xlu0 %v371
        %v373 = vpop.xlane.xlu0 %372
        %v374 = vsel %vm337, %v292, 0.0
        %v375 = vadd.f32 %v291, %v374
        %376 = vadd.xlane.f32.xlu0 %v375
        %v377 = vpop.xlane.xlu0 %376
        %v378 = vsel %vm337, %v294, 0.0
        %v379 = vadd.f32 %v293, %v378
        %380 = vadd.xlane.f32.xlu0 %v379
        %v381 = vpop.xlane.xlu0 %380
        %v382 = vsel %vm337, %v296, 0.0
        %v383 = vadd.f32 %v295, %v382
        %384 = vadd.xlane.f32.xlu0 %v383
        %v385 = vpop.xlane.xlu0 %384
        %v386 = vsel %vm337, %v298, 0.0
        %v387 = vadd.f32 %v297, %v386
        %388 = vadd.xlane.f32.xlu0 %v387
        %v389 = vpop.xlane.xlu0 %388
        %v390 = vsel %vm337, %v300, 0.0
        %v391 = vadd.f32 %v299, %v390
        %392 = vadd.xlane.f32.xlu0 %v391
        %v393 = vpop.xlane.xlu0 %392
        %v394 = vsel %vm337, %v302, 0.0
        %v395 = vadd.f32 %v301, %v394
        %396 = vadd.xlane.f32.xlu0 %v395
        %v397 = vpop.xlane.xlu0 %396
        %v398 = vsel %vm337, %v304, 0.0
        %v399 = vadd.f32 %v303, %v398
        %400 = vadd.xlane.f32.xlu0 %v399
        %v401 = vpop.xlane.xlu0 %400
        %v402 = vsel %vm337, %v306, 0.0
        %v403 = vadd.f32 %v305, %v402
        %404 = vadd.xlane.f32.xlu0 %v403
        %v405 = vpop.xlane.xlu0 %404
        %v406 = vsel %vm337, %v308, 0.0
        %v407 = vadd.f32 %v307, %v406
        %408 = vadd.xlane.f32.xlu0 %v407
        %v409 = vpop.xlane.xlu0 %408
        %v410 = vsel %vm337, %v310, 0.0
        %v411 = vadd.f32 %v309, %v410
        %412 = vadd.xlane.f32.xlu0 %v411
        %v413 = vpop.xlane.xlu0 %412
        %v414 = vsel %vm337, %v312, 0.0
        %v415 = vadd.f32 %v311, %v414
        %416 = vadd.xlane.f32.xlu0 %v415
        %v417 = vpop.xlane.xlu0 %416
        %v418 = vsel %vm337, %v314, 0.0
        %v419 = vadd.f32 %v313, %v418
        %420 = vadd.xlane.f32.xlu0 %v419
        %v421 = vpop.xlane.xlu0 %420
        %v422 = vsel %vm337, %v316, 0.0
        %v423 = vadd.f32 %v315, %v422
        %424 = vadd.xlane.f32.xlu0 %v423
        %v425 = vpop.xlane.xlu0 %424
        %v426 = vsel %vm337, %v318, 0.0
        %v427 = vadd.f32 %v317, %v426
        %428 = vadd.xlane.f32.xlu0 %v427
        %v429 = vpop.xlane.xlu0 %428
        %v430 = vsel %vm337, %v320, 0.0
        %v431 = vadd.f32 %v319, %v430
        %432 = vadd.xlane.f32.xlu0 %v431
        %v433 = vpop.xlane.xlu0 %432
        %v434 = vsel %vm337, %v322, 0.0
        %v435 = vadd.f32 %v321, %v434
        %436 = vadd.xlane.f32.xlu0 %v435
        %v437 = vpop.xlane.xlu0 %436
        %v438 = vsel %vm337, %v324, 0.0
        %v439 = vadd.f32 %v323, %v438
        %440 = vadd.xlane.f32.xlu0 %v439
        %v441 = vpop.xlane.xlu0 %440
        %v442 = vsel %vm337, %v326, 0.0
        %v443 = vadd.f32 %v325, %v442
        %444 = vadd.xlane.f32.xlu0 %v443
        %v445 = vpop.xlane.xlu0 %444
        %v446 = vsel %vm337, %v328, 0.0
        %v447 = vadd.f32 %v327, %v446
        %448 = vadd.xlane.f32.xlu0 %v447
        %v449 = vpop.xlane.xlu0 %448
        %v450 = vsel %vm337, %v330, 0.0
        %v451 = vadd.f32 %v329, %v450
        %452 = vadd.xlane.f32.xlu0 %v451
        %v453 = vpop.xlane.xlu0 %452
        %v454 = vsel %vm337, %v332, 0.0
        %v455 = vadd.f32 %v331, %v454
        %456 = vadd.xlane.f32.xlu0 %v455
        %v457 = vpop.xlane.xlu0 %456
        %v458 = vsel %vm337, %v334, 0.0
        %v459 = vadd.f32 %v333, %v458
        %460 = vadd.xlane.f32.xlu0 %v459
        %v461 = vpop.xlane.xlu0 %460
        %v462 = vsel %vm337, %v336, 0.0
        %v463 = vadd.f32 %v335, %v462
        %464 = vadd.xlane.f32.xlu0 %v463
        %v465 = vpop.xlane.xlu0 %464
        %v466 = vmul.f32 %v341, 0.0051020407
        %v467 = vmul.f32 %v345, 0.0051020407
        %v468 = vmul.f32 %v349, 0.0051020407
        %v469 = vmul.f32 %v353, 0.0051020407
        %v470 = vmul.f32 %v357, 0.0051020407
        %v471 = vmul.f32 %v361, 0.0051020407
        %v472 = vmul.f32 %v365, 0.0051020407
        %v473 = vmul.f32 %v369, 0.0051020407
        %v474 = vmul.f32 %v373, 0.0051020407
        %v475 = vmul.f32 %v377, 0.0051020407
        %v476 = vmul.f32 %v381, 0.0051020407
        %v477 = vmul.f32 %v385, 0.0051020407
        %v478 = vmul.f32 %v389, 0.0051020407
        %v479 = vmul.f32 %v393, 0.0051020407
        %v480 = vmul.f32 %v397, 0.0051020407
        %v481 = vmul.f32 %v401, 0.0051020407
        %v482 = vmul.f32 %v405, 0.0051020407
        %v483 = vmul.f32 %v409, 0.0051020407
        %v484 = vmul.f32 %v413, 0.0051020407
        %v485 = vmul.f32 %v417, 0.0051020407
        %v486 = vmul.f32 %v421, 0.0051020407
        %v487 = vmul.f32 %v425, 0.0051020407
        %v488 = vmul.f32 %v429, 0.0051020407
        %v489 = vmul.f32 %v433, 0.0051020407
        %v490 = vmul.f32 %v437, 0.0051020407
        %v491 = vmul.f32 %v441, 0.0051020407
        %v492 = vmul.f32 %v445, 0.0051020407
        %v493 = vmul.f32 %v449, 0.0051020407
        %v494 = vmul.f32 %v453, 0.0051020407
        %v495 = vmul.f32 %v457, 0.0051020407
        %v496 = vmul.f32 %v461, 0.0051020407
        %v497 = vmul.f32 %v465, 0.0051020407
        %v498 = vld [vmem:[%s1] sm:$0xff]
        %v499 = vld [vmem:[%s1 + $0x8] sm:$0xff]
        %v500 = vld [vmem:[%s1 + $0x10] sm:$0xff]
        %v501 = vld [vmem:[%s1 + $0x18] sm:$0xff]
        %v502 = vld [vmem:[%s1 + $0x20] sm:$0xff]
        %v503 = vld [vmem:[%s1 + $0x28] sm:$0xff]
        %v504 = vld [vmem:[%s1 + $0x30] sm:$0xff]
        %v505 = vld [vmem:[%s1 + $0x38] sm:$0xff]
        %v506 = vld [vmem:[%s1 + $0x40] sm:$0xff]
        %v507 = vld [vmem:[%s1 + $0x48] sm:$0xff]
        %v508 = vld [vmem:[%s1 + $0x50] sm:$0xff]
        %v509 = vld [vmem:[%s1 + $0x58] sm:$0xff]
        %v510 = vld [vmem:[%s1 + $0x60] sm:$0xff]
        %v511 = vld [vmem:[%s1 + $0x68] sm:$0xff]
        %v512 = vld [vmem:[%s1 + $0x70] sm:$0xff]
        %v513 = vld [vmem:[%s1 + $0x78] sm:$0xff]
        %v514 = vmul.f32 %v273, %v498
        %v515 = vmul.f32 %v274, %v499
        %v516 = vmul.f32 %v275, %v500
        %v517 = vmul.f32 %v276, %v501
        %v518 = vmul.f32 %v277, %v502
        %v519 = vmul.f32 %v278, %v503
        %v520 = vmul.f32 %v279, %v504
        %v521 = vmul.f32 %v280, %v505
        %v522 = vmul.f32 %v281, %v506
        %v523 = vmul.f32 %v282, %v507
        %v524 = vmul.f32 %v283, %v508
        %v525 = vmul.f32 %v284, %v509
        %v526 = vmul.f32 %v285, %v510
        %v527 = vmul.f32 %v286, %v511
        %v528 = vmul.f32 %v287, %v512
        %v529 = vmul.f32 %v288, %v513
        %v530 = vmul.f32 %v289, %v498
        %v531 = vmul.f32 %v290, %v499
        %v532 = vmul.f32 %v291, %v500
        %v533 = vmul.f32 %v292, %v501
        %v534 = vmul.f32 %v293, %v502
        %v535 = vmul.f32 %v294, %v503
        %v536 = vmul.f32 %v295, %v504
        %v537 = vmul.f32 %v296, %v505
        %v538 = vmul.f32 %v297, %v506
        %v539 = vmul.f32 %v298, %v507
        %v540 = vmul.f32 %v299, %v508
        %v541 = vmul.f32 %v300, %v509
        %v542 = vmul.f32 %v301, %v510
        %v543 = vmul.f32 %v302, %v511
        %v544 = vmul.f32 %v303, %v512
        %v545 = vmul.f32 %v304, %v513
        %v546 = vmul.f32 %v305, %v498
        %v547 = vmul.f32 %v306, %v499
        %v548 = vmul.f32 %v307, %v500
        %v549 = vmul.f32 %v308, %v501
        %v550 = vmul.f32 %v309, %v502
        %v551 = vmul.f32 %v310, %v503
        %v552 = vmul.f32 %v311, %v504
        %v553 = vmul.f32 %v312, %v505
        %v554 = vmul.f32 %v313, %v506
        %v555 = vmul.f32 %v314, %v507
        %v556 = vmul.f32 %v315, %v508
        %v557 = vmul.f32 %v316, %v509
        %v558 = vmul.f32 %v317, %v510
        %v559 = vmul.f32 %v318, %v511
        %v560 = vmul.f32 %v319, %v512
        %v561 = vmul.f32 %v320, %v513
        %v562 = vmul.f32 %v321, %v498
        %v563 = vmul.f32 %v322, %v499
        %v564 = vmul.f32 %v323, %v500
        %v565 = vmul.f32 %v324, %v501
        %v566 = vmul.f32 %v325, %v502
        %v567 = vmul.f32 %v326, %v503
        %v568 = vmul.f32 %v327, %v504
        %v569 = vmul.f32 %v328, %v505
        %v570 = vmul.f32 %v329, %v506
        %v571 = vmul.f32 %v330, %v507
        %v572 = vmul.f32 %v331, %v508
        %v573 = vmul.f32 %v332, %v509
        %v574 = vmul.f32 %v333, %v510
        %v575 = vmul.f32 %v334, %v511
        %v576 = vmul.f32 %v335, %v512
        %v577 = vmul.f32 %v336, %v513
        %v578 = vsel %vm337, %v515, 0.0
        %v579 = vadd.f32 %v514, %v578
        %580 = vadd.xlane.f32.xlu0 %v579
        %v581 = vpop.xlane.xlu0 %580
        %v582 = vsel %vm337, %v517, 0.0
        %v583 = vadd.f32 %v516, %v582
        %584 = vadd.xlane.f32.xlu0 %v583
        %v585 = vpop.xlane.xlu0 %584
        %v586 = vsel %vm337, %v519, 0.0
        %v587 = vadd.f32 %v518, %v586
        %588 = vadd.xlane.f32.xlu0 %v587
        %v589 = vpop.xlane.xlu0 %588
        %v590 = vsel %vm337, %v521, 0.0
        %v591 = vadd.f32 %v520, %v590
        %592 = vadd.xlane.f32.xlu0 %v591
        %v593 = vpop.xlane.xlu0 %592
        %v594 = vsel %vm337, %v523, 0.0
        %v595 = vadd.f32 %v522, %v594
        %596 = vadd.xlane.f32.xlu0 %v595
        %v597 = vpop.xlane.xlu0 %596
        %v598 = vsel %vm337, %v525, 0.0
        %v599 = vadd.f32 %v524, %v598
        %600 = vadd.xlane.f32.xlu0 %v599
        %v601 = vpop.xlane.xlu0 %600
        %v602 = vsel %vm337, %v527, 0.0
        %v603 = vadd.f32 %v526, %v602
        %604 = vadd.xlane.f32.xlu0 %v603
        %v605 = vpop.xlane.xlu0 %604
        %v606 = vsel %vm337, %v529, 0.0
        %v607 = vadd.f32 %v528, %v606
        %608 = vadd.xlane.f32.xlu0 %v607
        %v609 = vpop.xlane.xlu0 %608
        %v610 = vsel %vm337, %v531, 0.0
        %v611 = vadd.f32 %v530, %v610
        %612 = vadd.xlane.f32.xlu0 %v611
        %v613 = vpop.xlane.xlu0 %612
        %v614 = vsel %vm337, %v533, 0.0
        %v615 = vadd.f32 %v532, %v614
        %616 = vadd.xlane.f32.xlu0 %v615
        %v617 = vpop.xlane.xlu0 %616
        %v618 = vsel %vm337, %v535, 0.0
        %v619 = vadd.f32 %v534, %v618
        %620 = vadd.xlane.f32.xlu0 %v619
        %v621 = vpop.xlane.xlu0 %620
        %v622 = vsel %vm337, %v537, 0.0
        %v623 = vadd.f32 %v536, %v622
        %624 = vadd.xlane.f32.xlu0 %v623
        %v625 = vpop.xlane.xlu0 %624
        %v626 = vsel %vm337, %v539, 0.0
        %v627 = vadd.f32 %v538, %v626
        %628 = vadd.xlane.f32.xlu0 %v627
        %v629 = vpop.xlane.xlu0 %628
        %v630 = vsel %vm337, %v541, 0.0
        %v631 = vadd.f32 %v540, %v630
        %632 = vadd.xlane.f32.xlu0 %v631
        %v633 = vpop.xlane.xlu0 %632
        %v634 = vsel %vm337, %v543, 0.0
        %v635 = vadd.f32 %v542, %v634
        %636 = vadd.xlane.f32.xlu0 %v635
        %v637 = vpop.xlane.xlu0 %636
        %v638 = vsel %vm337, %v545, 0.0
        %v639 = vadd.f32 %v544, %v638
        %640 = vadd.xlane.f32.xlu0 %v639
        %v641 = vpop.xlane.xlu0 %640
        %v642 = vsel %vm337, %v547, 0.0
        %v643 = vadd.f32 %v546, %v642
        %644 = vadd.xlane.f32.xlu0 %v643
        %v645 = vpop.xlane.xlu0 %644
        %v646 = vsel %vm337, %v549, 0.0
        %v647 = vadd.f32 %v548, %v646
        %648 = vadd.xlane.f32.xlu0 %v647
        %v649 = vpop.xlane.xlu0 %648
        %v650 = vsel %vm337, %v551, 0.0
        %v651 = vadd.f32 %v550, %v650
        %652 = vadd.xlane.f32.xlu0 %v651
        %v653 = vpop.xlane.xlu0 %652
        %v654 = vsel %vm337, %v553, 0.0
        %v655 = vadd.f32 %v552, %v654
        %656 = vadd.xlane.f32.xlu0 %v655
        %v657 = vpop.xlane.xlu0 %656
        %v658 = vsel %vm337, %v555, 0.0
        %v659 = vadd.f32 %v554, %v658
        %660 = vadd.xlane.f32.xlu0 %v659
        %v661 = vpop.xlane.xlu0 %660
        %v662 = vsel %vm337, %v557, 0.0
        %v663 = vadd.f32 %v556, %v662
        %664 = vadd.xlane.f32.xlu0 %v663
        %v665 = vpop.xlane.xlu0 %664
        %v666 = vsel %vm337, %v559, 0.0
        %v667 = vadd.f32 %v558, %v666
        %668 = vadd.xlane.f32.xlu0 %v667
        %v669 = vpop.xlane.xlu0 %668
        %v670 = vsel %vm337, %v561, 0.0
        %v671 = vadd.f32 %v560, %v670
        %672 = vadd.xlane.f32.xlu0 %v671
        %v673 = vpop.xlane.xlu0 %672
        %v674 = vsel %vm337, %v563, 0.0
        %v675 = vadd.f32 %v562, %v674
        %676 = vadd.xlane.f32.xlu0 %v675
        %v677 = vpop.xlane.xlu0 %676
        %v678 = vsel %vm337, %v565, 0.0
        %v679 = vadd.f32 %v564, %v678
        %680 = vadd.xlane.f32.xlu0 %v679
        %v681 = vpop.xlane.xlu0 %680
        %v682 = vsel %vm337, %v567, 0.0
        %v683 = vadd.f32 %v566, %v682
        %684 = vadd.xlane.f32.xlu0 %v683
        %v685 = vpop.xlane.xlu0 %684
        %v686 = vsel %vm337, %v569, 0.0
        %v687 = vadd.f32 %v568, %v686
        %688 = vadd.xlane.f32.xlu0 %v687
        %v689 = vpop.xlane.xlu0 %688
        %v690 = vsel %vm337, %v571, 0.0
        %v691 = vadd.f32 %v570, %v690
        %692 = vadd.xlane.f32.xlu0 %v691
        %v693 = vpop.xlane.xlu0 %692
        %v694 = vsel %vm337, %v573, 0.0
        %v695 = vadd.f32 %v572, %v694
        %696 = vadd.xlane.f32.xlu0 %v695
        %v697 = vpop.xlane.xlu0 %696
        %v698 = vsel %vm337, %v575, 0.0
        %v699 = vadd.f32 %v574, %v698
        %700 = vadd.xlane.f32.xlu0 %v699
        %v701 = vpop.xlane.xlu0 %700
        %v702 = vsel %vm337, %v577, 0.0
        %v703 = vadd.f32 %v576, %v702
        %704 = vadd.xlane.f32.xlu0 %v703
        %v705 = vpop.xlane.xlu0 %704
        %v706 = vld [vmem:[%s2] sm:$0xff]
        %v707 = vld [vmem:[%s2 + $0x8] sm:$0xff]
        %v708 = vld [vmem:[%s2 + $0x10] sm:$0xff]
        %v709 = vld [vmem:[%s2 + $0x18] sm:$0xff]
        %v710 = vld [vmem:[%s2 + $0x20] sm:$0xff]
        %v711 = vld [vmem:[%s2 + $0x28] sm:$0xff]
        %v712 = vld [vmem:[%s2 + $0x30] sm:$0xff]
        %v713 = vld [vmem:[%s2 + $0x38] sm:$0xff]
        %v746 = vlaneseq
        %v747 = vand.u32 %v746, 127
        %v748 = vlaneseq
        %v749 = vshrl.u32 %v748, 7
        %v750 = vsub.s32 %v747, %v749
        %v751 = vrot.slane %v466, %v750
        %v752 = vadd.s32 %v747, 4294967288
        %v753 = vlaneseq
        %v754 = vshrl.u32 %v753, 7
        %v755 = vsub.s32 %v752, %v754
        %v756 = vrot.slane %v467, %v755
        %vm757 = vcmask 130112
        %v758 = vsel %vm757, %v756, %v751
        %v759 = vadd.s32 %v747, 4294967280
        %v760 = vlaneseq
        %v761 = vshrl.u32 %v760, 7
        %v762 = vsub.s32 %v759, %v761
        %v763 = vrot.slane %v468, %v762
        %vm764 = vcmask 195712
        %v765 = vsel %vm764, %v763, %v758
        %v766 = vadd.s32 %v747, 4294967272
        %v767 = vlaneseq
        %v768 = vshrl.u32 %v767, 7
        %v769 = vsub.s32 %v766, %v768
        %v770 = vrot.slane %v469, %v769
        %vm771 = vcmask 261312
        %v772 = vsel %vm771, %v770, %v765
        %v773 = vadd.s32 %v747, 4294967264
        %v774 = vlaneseq
        %v775 = vshrl.u32 %v774, 7
        %v776 = vsub.s32 %v773, %v775
        %v777 = vrot.slane %v470, %v776
        %vm778 = vcmask 326912
        %v779 = vsel %vm778, %v777, %v772
        %v780 = vadd.s32 %v747, 4294967256
        %v781 = vlaneseq
        %v782 = vshrl.u32 %v781, 7
        %v783 = vsub.s32 %v780, %v782
        %v784 = vrot.slane %v471, %v783
        %vm785 = vcmask 392512
        %v786 = vsel %vm785, %v784, %v779
        %v787 = vadd.s32 %v747, 4294967248
        %v788 = vlaneseq
        %v789 = vshrl.u32 %v788, 7
        %v790 = vsub.s32 %v787, %v789
        %v791 = vrot.slane %v472, %v790
        %vm792 = vcmask 458112
        %v793 = vsel %vm792, %v791, %v786
        %v794 = vadd.s32 %v747, 4294967240
        %v795 = vlaneseq
        %v796 = vshrl.u32 %v795, 7
        %v797 = vsub.s32 %v794, %v796
        %v798 = vrot.slane %v473, %v797
        %vm799 = vcmask 523712
        %v800 = vsel %vm799, %v798, %v793
        %v801 = vlaneseq
        %v802 = vshrl.u32 %v801, 7
        %v803 = vsub.s32 %v747, %v802
        %v804 = vrot.slane %v474, %v803
        %v805 = vlaneseq
        %v806 = vshrl.u32 %v805, 7
        %v807 = vsub.s32 %v752, %v806
        %v808 = vrot.slane %v475, %v807
        %v809 = vsel %vm757, %v808, %v804
        %v810 = vlaneseq
        %v811 = vshrl.u32 %v810, 7
        %v812 = vsub.s32 %v759, %v811
        %v813 = vrot.slane %v476, %v812
        %v814 = vsel %vm764, %v813, %v809
        %v815 = vlaneseq
        %v816 = vshrl.u32 %v815, 7
        %v817 = vsub.s32 %v766, %v816
        %v818 = vrot.slane %v477, %v817
        %v819 = vsel %vm771, %v818, %v814
        %v820 = vlaneseq
        %v821 = vshrl.u32 %v820, 7
        %v822 = vsub.s32 %v773, %v821
        %v823 = vrot.slane %v478, %v822
        %v824 = vsel %vm778, %v823, %v819
        %v825 = vlaneseq
        %v826 = vshrl.u32 %v825, 7
        %v827 = vsub.s32 %v780, %v826
        %v828 = vrot.slane %v479, %v827
        %v829 = vsel %vm785, %v828, %v824
        %v830 = vlaneseq
        %v831 = vshrl.u32 %v830, 7
        %v832 = vsub.s32 %v787, %v831
        %v833 = vrot.slane %v480, %v832
        %v834 = vsel %vm792, %v833, %v829
        %v835 = vlaneseq
        %v836 = vshrl.u32 %v835, 7
        %v837 = vsub.s32 %v794, %v836
        %v838 = vrot.slane %v481, %v837
        %v839 = vsel %vm799, %v838, %v834
        %v840 = vlaneseq
        %v841 = vshrl.u32 %v840, 7
        %v842 = vsub.s32 %v747, %v841
        %v843 = vrot.slane %v482, %v842
        %v844 = vlaneseq
        %v845 = vshrl.u32 %v844, 7
        %v846 = vsub.s32 %v752, %v845
        %v847 = vrot.slane %v483, %v846
        %v848 = vsel %vm757, %v847, %v843
        %v849 = vlaneseq
        %v850 = vshrl.u32 %v849, 7
        %v851 = vsub.s32 %v759, %v850
        %v852 = vrot.slane %v484, %v851
        %v853 = vsel %vm764, %v852, %v848
        %v854 = vlaneseq
        %v855 = vshrl.u32 %v854, 7
        %v856 = vsub.s32 %v766, %v855
        %v857 = vrot.slane %v485, %v856
        %v858 = vsel %vm771, %v857, %v853
        %v859 = vlaneseq
        %v860 = vshrl.u32 %v859, 7
        %v861 = vsub.s32 %v773, %v860
        %v862 = vrot.slane %v486, %v861
        %v863 = vsel %vm778, %v862, %v858
        %v864 = vlaneseq
        %v865 = vshrl.u32 %v864, 7
        %v866 = vsub.s32 %v780, %v865
        %v867 = vrot.slane %v487, %v866
        %v868 = vsel %vm785, %v867, %v863
        %v869 = vlaneseq
        %v870 = vshrl.u32 %v869, 7
        %v871 = vsub.s32 %v787, %v870
        %v872 = vrot.slane %v488, %v871
        %v873 = vsel %vm792, %v872, %v868
        %v874 = vlaneseq
        %v875 = vshrl.u32 %v874, 7
        %v876 = vsub.s32 %v794, %v875
        %v877 = vrot.slane %v489, %v876
        %v878 = vsel %vm799, %v877, %v873
        %v879 = vlaneseq
        %v880 = vshrl.u32 %v879, 7
        %v881 = vsub.s32 %v747, %v880
        %v882 = vrot.slane %v490, %v881
        %v883 = vlaneseq
        %v884 = vshrl.u32 %v883, 7
        %v885 = vsub.s32 %v752, %v884
        %v886 = vrot.slane %v491, %v885
        %v887 = vsel %vm757, %v886, %v882
        %v888 = vlaneseq
        %v889 = vshrl.u32 %v888, 7
        %v890 = vsub.s32 %v759, %v889
        %v891 = vrot.slane %v492, %v890
        %v892 = vsel %vm764, %v891, %v887
        %v893 = vlaneseq
        %v894 = vshrl.u32 %v893, 7
        %v895 = vsub.s32 %v766, %v894
        %v896 = vrot.slane %v493, %v895
        %v897 = vsel %vm771, %v896, %v892
        %v898 = vlaneseq
        %v899 = vshrl.u32 %v898, 7
        %v900 = vsub.s32 %v773, %v899
        %v901 = vrot.slane %v494, %v900
        %v902 = vsel %vm778, %v901, %v897
        %v903 = vlaneseq
        %v904 = vshrl.u32 %v903, 7
        %v905 = vsub.s32 %v780, %v904
        %v906 = vrot.slane %v495, %v905
        %v907 = vsel %vm785, %v906, %v902
        %v908 = vlaneseq
        %v909 = vshrl.u32 %v908, 7
        %v910 = vsub.s32 %v787, %v909
        %v911 = vrot.slane %v496, %v910
        %v912 = vsel %vm792, %v911, %v907
        %v913 = vlaneseq
        %v914 = vshrl.u32 %v913, 7
        %v915 = vsub.s32 %v794, %v914
        %v916 = vrot.slane %v497, %v915
        %v917 = vsel %vm799, %v916, %v912
        %vm918 = vcmask 1041409
        %v919 = vsel %vm918, %v839, %v800
        %vm920 = vcmask 1042434
        %v921 = vsel %vm920, %v878, %v919
        %vm922 = vcmask 1043459
        %v923 = vsel %vm922, %v917, %v921
        %vm924 = vcmask 523264
        %v925 = vsel %vm924, %v923, 0
        %927 = vmatprep.subr.mxu0 0.0
        %928 = vmatpush1.msra.mxu0 %v706
        %929 = vmatprep.subr.mxu0 0.0
        %930 = vmatpush1.msra.mxu0 %v707
        %931 = vmatprep.subr.mxu0 0.0
        %932 = vmatpush1.msra.mxu0 %v708
        %933 = vmatprep.subr.mxu0 0.0
        %934 = vmatpush1.msra.mxu0 %v709
        %935 = vmatprep.subr.mxu0 0.0
        %936 = vmatpush1.msra.mxu0 %v710
        %937 = vmatprep.subr.mxu0 0.0
        %938 = vmatpush1.msra.mxu0 %v711
        %939 = vmatprep.subr.mxu0 0.0
        %940 = vmatpush1.msra.mxu0 %v712
        %941 = vmatprep.subr.mxu0 0.0
        %942 = vmatpush1.msra.mxu0 %v713
        %943 = vmatprep.subr.mxu0 0.0
        %944 = vmatpush1.msra.mxu0 0.0
        %945 = vmatprep.subr.mxu0 0.0
        %946 = vmatpush1.msra.mxu0 0.0
        %947 = vmatprep.subr.mxu0 0.0
        %948 = vmatpush1.msra.mxu0 0.0
        %949 = vmatprep.subr.mxu0 0.0
        %950 = vmatpush1.msra.mxu0 0.0
        %951 = vmatprep.subr.mxu0 0.0
        %952 = vmatpush1.msra.mxu0 0.0
        %953 = vmatprep.subr.mxu0 0.0
        %954 = vmatpush1.msra.mxu0 0.0
        %955 = vmatprep.subr.mxu0 0.0
        %956 = vmatpush1.msra.mxu0 0.0
        %957 = vmatprep.subr.mxu0 0.0
        %958 = vmatpush1.msra.mxu0 0.0
        %959 = vmatprep.subr.mxu0 0.0
        %960 = vmatpush1.msra.mxu0 0.0
        %961 = vmatprep.subr.mxu0 0.0
        %962 = vmatpush1.msra.mxu0 0.0
        %963 = vmatprep.subr.mxu0 0.0
        %964 = vmatpush1.msra.mxu0 0.0
        %965 = vmatprep.subr.mxu0 0.0
        %966 = vmatpush1.msra.mxu0 0.0
        %967 = vmatprep.subr.mxu0 0.0
        %968 = vmatpush1.msra.mxu0 0.0
        %969 = vmatprep.subr.mxu0 0.0
        %970 = vmatpush1.msra.mxu0 0.0
        %971 = vmatprep.subr.mxu0 0.0
        %972 = vmatpush1.msra.mxu0 0.0
        %973 = vmatprep.subr.mxu0 0.0
        %974 = vmatpush1.msra.mxu0 0.0
        %975 = vmatprep.subr.mxu0 0.0
        %976 = vmatpush1.msra.mxu0 0.0
        %977 = vmatprep.subr.mxu0 0.0
        %978 = vmatpush1.msra.mxu0 0.0
        %979 = vmatprep.subr.mxu0 0.0
        %980 = vmatpush1.msra.mxu0 0.0
        %981 = vmatprep.subr.mxu0 0.0
        %982 = vmatpush1.msra.mxu0 0.0
        %983 = vmatprep.subr.mxu0 0.0
        %984 = vmatpush1.msra.mxu0 0.0
        %985 = vmatprep.subr.mxu0 0.0
        %986 = vmatpush1.msra.mxu0 0.0
        %987 = vmatprep.subr.mxu0 0.0
        %988 = vmatpush1.msra.mxu0 0.0
        %989 = vmatprep.subr.mxu0 0.0
        %990 = vmatpush1.msra.mxu0 0.0
        %991 = vmatprep.mubr.f32.mxu0 0.0
        %992 = vmatmul.mubr.f32.gmra.mrb[0].mxu0 %v925
        %v993 = vpop.f32.mrb[0].mxu0
        %v994 = vadd.f32 0.0, %v993
        %v995 = vpop.f32.mrb[0].mxu0
        %996 = vdwg.mxu0
        %v997 = vmax.f32 %v994, 0.0
        %v998 = vld [vmem:[%s3] sm:$0xf]
        %vm999 = vcmask 31744
        %v1001 = vsel %vm999, %v997, 0
        %vm1003 = vcmask 1043456
        %v1005 = vsel %vm1003, %v998, 0
        %1007 = vmatprep.subr.mxu0 0.0
        %1008 = vmatpush1.msra.mxu0 %v1005
        %1009 = vmatprep.subr.mxu0 0.0
        %1010 = vmatpush1.msra.mxu0 0.0
        %1011 = vmatprep.subr.mxu0 0.0
        %1012 = vmatpush1.msra.mxu0 0.0
        %1013 = vmatprep.subr.mxu0 0.0
        %1014 = vmatpush1.msra.mxu0 0.0
        %1015 = vmatprep.subr.mxu0 0.0
        %1016 = vmatpush1.msra.mxu0 0.0
        %1017 = vmatprep.subr.mxu0 0.0
        %1018 = vmatpush1.msra.mxu0 0.0
        %1019 = vmatprep.subr.mxu0 0.0
        %1020 = vmatpush1.msra.mxu0 0.0
        %1021 = vmatprep.subr.mxu0 0.0
        %1022 = vmatpush1.msra.mxu0 0.0
        %1023 = vmatprep.subr.mxu0 0.0
        %1024 = vmatpush1.msra.mxu0 0.0
        %1025 = vmatprep.subr.mxu0 0.0
        %1026 = vmatpush1.msra.mxu0 0.0
        %1027 = vmatprep.subr.mxu0 0.0
        %1028 = vmatpush1.msra.mxu0 0.0
        %1029 = vmatprep.subr.mxu0 0.0
        %1030 = vmatpush1.msra.mxu0 0.0
        %1031 = vmatprep.subr.mxu0 0.0
        %1032 = vmatpush1.msra.mxu0 0.0
        %1033 = vmatprep.subr.mxu0 0.0
        %1034 = vmatpush1.msra.mxu0 0.0
        %1035 = vmatprep.subr.mxu0 0.0
        %1036 = vmatpush1.msra.mxu0 0.0
        %1037 = vmatprep.subr.mxu0 0.0
        %1038 = vmatpush1.msra.mxu0 0.0
        %1039 = vmatprep.subr.mxu0 0.0
        %1040 = vmatpush1.msra.mxu0 0.0
        %1041 = vmatprep.subr.mxu0 0.0
        %1042 = vmatpush1.msra.mxu0 0.0
        %1043 = vmatprep.subr.mxu0 0.0
        %1044 = vmatpush1.msra.mxu0 0.0
        %1045 = vmatprep.subr.mxu0 0.0
        %1046 = vmatpush1.msra.mxu0 0.0
        %1047 = vmatprep.subr.mxu0 0.0
        %1048 = vmatpush1.msra.mxu0 0.0
        %1049 = vmatprep.subr.mxu0 0.0
        %1050 = vmatpush1.msra.mxu0 0.0
        %1051 = vmatprep.subr.mxu0 0.0
        %1052 = vmatpush1.msra.mxu0 0.0
        %1053 = vmatprep.subr.mxu0 0.0
        %1054 = vmatpush1.msra.mxu0 0.0
        %1055 = vmatprep.subr.mxu0 0.0
        %1056 = vmatpush1.msra.mxu0 0.0
        %1057 = vmatprep.subr.mxu0 0.0
        %1058 = vmatpush1.msra.mxu0 0.0
        %1059 = vmatprep.subr.mxu0 0.0
        %1060 = vmatpush1.msra.mxu0 0.0
        %1061 = vmatprep.subr.mxu0 0.0
        %1062 = vmatpush1.msra.mxu0 0.0
        %1063 = vmatprep.subr.mxu0 0.0
        %1064 = vmatpush1.msra.mxu0 0.0
        %1065 = vmatprep.subr.mxu0 0.0
        %1066 = vmatpush1.msra.mxu0 0.0
        %1067 = vmatprep.subr.mxu0 0.0
        %1068 = vmatpush1.msra.mxu0 0.0
        %1069 = vmatprep.subr.mxu0 0.0
        %1070 = vmatpush1.msra.mxu0 0.0
        %1071 = vmatprep.mubr.f32.mxu0 0.0
        %1072 = vmatmul.mubr.f32.gmra.mrb[0].mxu0 %v1001
        %v1073 = vpop.f32.mrb[0].mxu0
        %v1074 = vadd.f32 0.0, %v1073
        %v1075 = vpop.f32.mrb[0].mxu0
        %1076 = vdwg.mxu0
        %v1077 = vsub.f32 0.0, %v1074
        %v1078 = vmul.f32 %v1077, 1.442695
        %v1079 = vpow.pop %v1078
        %v1080 = vadd.f32 %v1079, 1.0
        %v1081 = vrcp.pop %v1080
        %v1114 = vlaneseq
        %v1115 = vshrl.u32 %v1114, 7
        %v1116 = vsub.s32 %v747, %v1115
        %v1117 = vrot.slane %v581, %v1116
        %v1118 = vlaneseq
        %v1119 = vshrl.u32 %v1118, 7
        %v1120 = vsub.s32 %v752, %v1119
        %v1121 = vrot.slane %v585, %v1120
        %v1122 = vsel %vm757, %v1121, %v1117
        %v1123 = vlaneseq
        %v1124 = vshrl.u32 %v1123, 7
        %v1125 = vsub.s32 %v759, %v1124
        %v1126 = vrot.slane %v589, %v1125
        %v1127 = vsel %vm764, %v1126, %v1122
        %v1128 = vlaneseq
        %v1129 = vshrl.u32 %v1128, 7
        %v1130 = vsub.s32 %v766, %v1129
        %v1131 = vrot.slane %v593, %v1130
        %v1132 = vsel %vm771, %v1131, %v1127
        %v1133 = vlaneseq
        %v1134 = vshrl.u32 %v1133, 7
        %v1135 = vsub.s32 %v773, %v1134
        %v1136 = vrot.slane %v597, %v1135
        %v1137 = vsel %vm778, %v1136, %v1132
        %v1138 = vlaneseq
        %v1139 = vshrl.u32 %v1138, 7
        %v1140 = vsub.s32 %v780, %v1139
        %v1141 = vrot.slane %v601, %v1140
        %v1142 = vsel %vm785, %v1141, %v1137
        %v1143 = vlaneseq
        %v1144 = vshrl.u32 %v1143, 7
        %v1145 = vsub.s32 %v787, %v1144
        %v1146 = vrot.slane %v605, %v1145
        %v1147 = vsel %vm792, %v1146, %v1142
        %v1148 = vlaneseq
        %v1149 = vshrl.u32 %v1148, 7
        %v1150 = vsub.s32 %v794, %v1149
        %v1151 = vrot.slane %v609, %v1150
        %v1152 = vsel %vm799, %v1151, %v1147
        %v1153 = vlaneseq
        %v1154 = vshrl.u32 %v1153, 7
        %v1155 = vsub.s32 %v747, %v1154
        %v1156 = vrot.slane %v613, %v1155
        %v1157 = vlaneseq
        %v1158 = vshrl.u32 %v1157, 7
        %v1159 = vsub.s32 %v752, %v1158
        %v1160 = vrot.slane %v617, %v1159
        %v1161 = vsel %vm757, %v1160, %v1156
        %v1162 = vlaneseq
        %v1163 = vshrl.u32 %v1162, 7
        %v1164 = vsub.s32 %v759, %v1163
        %v1165 = vrot.slane %v621, %v1164
        %v1166 = vsel %vm764, %v1165, %v1161
        %v1167 = vlaneseq
        %v1168 = vshrl.u32 %v1167, 7
        %v1169 = vsub.s32 %v766, %v1168
        %v1170 = vrot.slane %v625, %v1169
        %v1171 = vsel %vm771, %v1170, %v1166
        %v1172 = vlaneseq
        %v1173 = vshrl.u32 %v1172, 7
        %v1174 = vsub.s32 %v773, %v1173
        %v1175 = vrot.slane %v629, %v1174
        %v1176 = vsel %vm778, %v1175, %v1171
        %v1177 = vlaneseq
        %v1178 = vshrl.u32 %v1177, 7
        %v1179 = vsub.s32 %v780, %v1178
        %v1180 = vrot.slane %v633, %v1179
        %v1181 = vsel %vm785, %v1180, %v1176
        %v1182 = vlaneseq
        %v1183 = vshrl.u32 %v1182, 7
        %v1184 = vsub.s32 %v787, %v1183
        %v1185 = vrot.slane %v637, %v1184
        %v1186 = vsel %vm792, %v1185, %v1181
        %v1187 = vlaneseq
        %v1188 = vshrl.u32 %v1187, 7
        %v1189 = vsub.s32 %v794, %v1188
        %v1190 = vrot.slane %v641, %v1189
        %v1191 = vsel %vm799, %v1190, %v1186
        %v1192 = vlaneseq
        %v1193 = vshrl.u32 %v1192, 7
        %v1194 = vsub.s32 %v747, %v1193
        %v1195 = vrot.slane %v645, %v1194
        %v1196 = vlaneseq
        %v1197 = vshrl.u32 %v1196, 7
        %v1198 = vsub.s32 %v752, %v1197
        %v1199 = vrot.slane %v649, %v1198
        %v1200 = vsel %vm757, %v1199, %v1195
        %v1201 = vlaneseq
        %v1202 = vshrl.u32 %v1201, 7
        %v1203 = vsub.s32 %v759, %v1202
        %v1204 = vrot.slane %v653, %v1203
        %v1205 = vsel %vm764, %v1204, %v1200
        %v1206 = vlaneseq
        %v1207 = vshrl.u32 %v1206, 7
        %v1208 = vsub.s32 %v766, %v1207
        %v1209 = vrot.slane %v657, %v1208
        %v1210 = vsel %vm771, %v1209, %v1205
        %v1211 = vlaneseq
        %v1212 = vshrl.u32 %v1211, 7
        %v1213 = vsub.s32 %v773, %v1212
        %v1214 = vrot.slane %v661, %v1213
        %v1215 = vsel %vm778, %v1214, %v1210
        %v1216 = vlaneseq
        %v1217 = vshrl.u32 %v1216, 7
        %v1218 = vsub.s32 %v780, %v1217
        %v1219 = vrot.slane %v665, %v1218
        %v1220 = vsel %vm785, %v1219, %v1215
        %v1221 = vlaneseq
        %v1222 = vshrl.u32 %v1221, 7
        %v1223 = vsub.s32 %v787, %v1222
        %v1224 = vrot.slane %v669, %v1223
        %v1225 = vsel %vm792, %v1224, %v1220
        %v1226 = vlaneseq
        %v1227 = vshrl.u32 %v1226, 7
        %v1228 = vsub.s32 %v794, %v1227
        %v1229 = vrot.slane %v673, %v1228
        %v1230 = vsel %vm799, %v1229, %v1225
        %v1231 = vlaneseq
        %v1232 = vshrl.u32 %v1231, 7
        %v1233 = vsub.s32 %v747, %v1232
        %v1234 = vrot.slane %v677, %v1233
        %v1235 = vlaneseq
        %v1236 = vshrl.u32 %v1235, 7
        %v1237 = vsub.s32 %v752, %v1236
        %v1238 = vrot.slane %v681, %v1237
        %v1239 = vsel %vm757, %v1238, %v1234
        %v1240 = vlaneseq
        %v1241 = vshrl.u32 %v1240, 7
        %v1242 = vsub.s32 %v759, %v1241
        %v1243 = vrot.slane %v685, %v1242
        %v1244 = vsel %vm764, %v1243, %v1239
        %v1245 = vlaneseq
        %v1246 = vshrl.u32 %v1245, 7
        %v1247 = vsub.s32 %v766, %v1246
        %v1248 = vrot.slane %v689, %v1247
        %v1249 = vsel %vm771, %v1248, %v1244
        %v1250 = vlaneseq
        %v1251 = vshrl.u32 %v1250, 7
        %v1252 = vsub.s32 %v773, %v1251
        %v1253 = vrot.slane %v693, %v1252
        %v1254 = vsel %vm778, %v1253, %v1249
        %v1255 = vlaneseq
        %v1256 = vshrl.u32 %v1255, 7
        %v1257 = vsub.s32 %v780, %v1256
        %v1258 = vrot.slane %v697, %v1257
        %v1259 = vsel %vm785, %v1258, %v1254
        %v1260 = vlaneseq
        %v1261 = vshrl.u32 %v1260, 7
        %v1262 = vsub.s32 %v787, %v1261
        %v1263 = vrot.slane %v701, %v1262
        %v1264 = vsel %vm792, %v1263, %v1259
        %v1265 = vlaneseq
        %v1266 = vshrl.u32 %v1265, 7
        %v1267 = vsub.s32 %v794, %v1266
        %v1268 = vrot.slane %v705, %v1267
        %v1269 = vsel %vm799, %v1268, %v1264
        %v1270 = vsel %vm918, %v1191, %v1152
        %v1271 = vsel %vm920, %v1230, %v1270
        %v1272 = vsel %vm922, %v1269, %v1271
        %v1274 = vmul.f32 %v1081, %v1272
        %v1275 = vld [vmem:[%s4] sm:$0xff]
        %v1276 = vld [vmem:[%s4 + $0x8] sm:$0xff]
        %v1277 = vld [vmem:[%s4 + $0x10] sm:$0xff]
        %v1278 = vld [vmem:[%s4 + $0x18] sm:$0xff]
        %v1279 = vld [vmem:[%s4 + $0x20] sm:$0xff]
        %v1280 = vld [vmem:[%s4 + $0x28] sm:$0xff]
        %v1281 = vld [vmem:[%s4 + $0x30] sm:$0xff]
        %v1282 = vld [vmem:[%s4 + $0x38] sm:$0xff]
        %v1284 = vsel %vm924, %v1274, 0
        %1286 = vmatprep.subr.mxu0 0.0
        %1287 = vmatpush1.msra.mxu0 %v1275
        %1288 = vmatprep.subr.mxu0 0.0
        %1289 = vmatpush1.msra.mxu0 %v1276
        %1290 = vmatprep.subr.mxu0 0.0
        %1291 = vmatpush1.msra.mxu0 %v1277
        %1292 = vmatprep.subr.mxu0 0.0
        %1293 = vmatpush1.msra.mxu0 %v1278
        %1294 = vmatprep.subr.mxu0 0.0
        %1295 = vmatpush1.msra.mxu0 %v1279
        %1296 = vmatprep.subr.mxu0 0.0
        %1297 = vmatpush1.msra.mxu0 %v1280
        %1298 = vmatprep.subr.mxu0 0.0
        %1299 = vmatpush1.msra.mxu0 %v1281
        %1300 = vmatprep.subr.mxu0 0.0
        %1301 = vmatpush1.msra.mxu0 %v1282
        %1302 = vmatprep.subr.mxu0 0.0
        %1303 = vmatpush1.msra.mxu0 0.0
        %1304 = vmatprep.subr.mxu0 0.0
        %1305 = vmatpush1.msra.mxu0 0.0
        %1306 = vmatprep.subr.mxu0 0.0
        %1307 = vmatpush1.msra.mxu0 0.0
        %1308 = vmatprep.subr.mxu0 0.0
        %1309 = vmatpush1.msra.mxu0 0.0
        %1310 = vmatprep.subr.mxu0 0.0
        %1311 = vmatpush1.msra.mxu0 0.0
        %1312 = vmatprep.subr.mxu0 0.0
        %1313 = vmatpush1.msra.mxu0 0.0
        %1314 = vmatprep.subr.mxu0 0.0
        %1315 = vmatpush1.msra.mxu0 0.0
        %1316 = vmatprep.subr.mxu0 0.0
        %1317 = vmatpush1.msra.mxu0 0.0
        %1318 = vmatprep.subr.mxu0 0.0
        %1319 = vmatpush1.msra.mxu0 0.0
        %1320 = vmatprep.subr.mxu0 0.0
        %1321 = vmatpush1.msra.mxu0 0.0
        %1322 = vmatprep.subr.mxu0 0.0
        %1323 = vmatpush1.msra.mxu0 0.0
        %1324 = vmatprep.subr.mxu0 0.0
        %1325 = vmatpush1.msra.mxu0 0.0
        %1326 = vmatprep.subr.mxu0 0.0
        %1327 = vmatpush1.msra.mxu0 0.0
        %1328 = vmatprep.subr.mxu0 0.0
        %1329 = vmatpush1.msra.mxu0 0.0
        %1330 = vmatprep.subr.mxu0 0.0
        %1331 = vmatpush1.msra.mxu0 0.0
        %1332 = vmatprep.subr.mxu0 0.0
        %1333 = vmatpush1.msra.mxu0 0.0
        %1334 = vmatprep.subr.mxu0 0.0
        %1335 = vmatpush1.msra.mxu0 0.0
        %1336 = vmatprep.subr.mxu0 0.0
        %1337 = vmatpush1.msra.mxu0 0.0
        %1338 = vmatprep.subr.mxu0 0.0
        %1339 = vmatpush1.msra.mxu0 0.0
        %1340 = vmatprep.subr.mxu0 0.0
        %1341 = vmatpush1.msra.mxu0 0.0
        %1342 = vmatprep.subr.mxu0 0.0
        %1343 = vmatpush1.msra.mxu0 0.0
        %1344 = vmatprep.subr.mxu0 0.0
        %1345 = vmatpush1.msra.mxu0 0.0
        %1346 = vmatprep.subr.mxu0 0.0
        %1347 = vmatpush1.msra.mxu0 0.0
        %1348 = vmatprep.subr.mxu0 0.0
        %1349 = vmatpush1.msra.mxu0 0.0
        %1350 = vmatprep.mubr.f32.mxu0 0.0
        %1351 = vmatmul.mubr.f32.gmra.mrb[0].mxu0 %v1284
        %v1352 = vpop.f32.mrb[0].mxu0
        %v1353 = vadd.f32 0.0, %v1352
        %v1354 = vpop.f32.mrb[0].mxu0
        %1355 = vdwg.mxu0
        %v1356 = vmax.f32 %v1353, 0.0
        %v1357 = vld [vmem:[%s5] sm:$0xf]
        %v1359 = vsel %vm999, %v1356, 0
        %v1362 = vsel %vm1003, %v1357, 0
        %1364 = vmatprep.subr.mxu0 0.0
        %1365 = vmatpush1.msra.mxu0 %v1362
        %1366 = vmatprep.subr.mxu0 0.0
        %1367 = vmatpush1.msra.mxu0 0.0
        %1368 = vmatprep.subr.mxu0 0.0
        %1369 = vmatpush1.msra.mxu0 0.0
        %1370 = vmatprep.subr.mxu0 0.0
        %1371 = vmatpush1.msra.mxu0 0.0
        %1372 = vmatprep.subr.mxu0 0.0
        %1373 = vmatpush1.msra.mxu0 0.0
        %1374 = vmatprep.subr.mxu0 0.0
        %1375 = vmatpush1.msra.mxu0 0.0
        %1376 = vmatprep.subr.mxu0 0.0
        %1377 = vmatpush1.msra.mxu0 0.0
        %1378 = vmatprep.subr.mxu0 0.0
        %1379 = vmatpush1.msra.mxu0 0.0
        %1380 = vmatprep.subr.mxu0 0.0
        %1381 = vmatpush1.msra.mxu0 0.0
        %1382 = vmatprep.subr.mxu0 0.0
        %1383 = vmatpush1.msra.mxu0 0.0
        %1384 = vmatprep.subr.mxu0 0.0
        %1385 = vmatpush1.msra.mxu0 0.0
        %1386 = vmatprep.subr.mxu0 0.0
        %1387 = vmatpush1.msra.mxu0 0.0
        %1388 = vmatprep.subr.mxu0 0.0
        %1389 = vmatpush1.msra.mxu0 0.0
        %1390 = vmatprep.subr.mxu0 0.0
        %1391 = vmatpush1.msra.mxu0 0.0
        %1392 = vmatprep.subr.mxu0 0.0
        %1393 = vmatpush1.msra.mxu0 0.0
        %1394 = vmatprep.subr.mxu0 0.0
        %1395 = vmatpush1.msra.mxu0 0.0
        %1396 = vmatprep.subr.mxu0 0.0
        %1397 = vmatpush1.msra.mxu0 0.0
        %1398 = vmatprep.subr.mxu0 0.0
        %1399 = vmatpush1.msra.mxu0 0.0
        %1400 = vmatprep.subr.mxu0 0.0
        %1401 = vmatpush1.msra.mxu0 0.0
        %1402 = vmatprep.subr.mxu0 0.0
        %1403 = vmatpush1.msra.mxu0 0.0
        %1404 = vmatprep.subr.mxu0 0.0
        %1405 = vmatpush1.msra.mxu0 0.0
        %1406 = vmatprep.subr.mxu0 0.0
        %1407 = vmatpush1.msra.mxu0 0.0
        %1408 = vmatprep.subr.mxu0 0.0
        %1409 = vmatpush1.msra.mxu0 0.0
        %1410 = vmatprep.subr.mxu0 0.0
        %1411 = vmatpush1.msra.mxu0 0.0
        %1412 = vmatprep.subr.mxu0 0.0
        %1413 = vmatpush1.msra.mxu0 0.0
        %1414 = vmatprep.subr.mxu0 0.0
        %1415 = vmatpush1.msra.mxu0 0.0
        %1416 = vmatprep.subr.mxu0 0.0
        %1417 = vmatpush1.msra.mxu0 0.0
        %1418 = vmatprep.subr.mxu0 0.0
        %1419 = vmatpush1.msra.mxu0 0.0
        %1420 = vmatprep.subr.mxu0 0.0
        %1421 = vmatpush1.msra.mxu0 0.0
        %1422 = vmatprep.subr.mxu0 0.0
        %1423 = vmatpush1.msra.mxu0 0.0
        %1424 = vmatprep.subr.mxu0 0.0
        %1425 = vmatpush1.msra.mxu0 0.0
        %1426 = vmatprep.subr.mxu0 0.0
        %1427 = vmatpush1.msra.mxu0 0.0
        %1428 = vmatprep.mubr.f32.mxu0 0.0
        %1429 = vmatmul.mubr.f32.gmra.mrb[0].mxu0 %v1359
        %v1430 = vpop.f32.mrb[0].mxu0
        %v1431 = vadd.f32 0.0, %v1430
        %v1432 = vpop.f32.mrb[0].mxu0
        %1433 = vdwg.mxu0
        %v1434 = vsub.f32 0.0, %v1431
        %v1435 = vmul.f32 %v1434, 1.442695
        %v1436 = vpow.pop %v1435
        %v1437 = vadd.f32 %v1436, 1.0
        %v1438 = vrcp.pop %v1437
        %v1439 = vmul.f32 %v1081, %v1438
        %v1440 = vlaneseq
        %v1441 = vshrl.u32 %v1440, 7
        %v1442 = vsub.s32 0, %v1441
        %v1443 = vrot.slane %v1439, %v1442
        %1445 = vbcast.lane.b32.xlu0 %v1443, 256
        %v1446 = vpop.permute.xlu0 %1445
        %s1448 = sor.u32 256, 8
        %1449 = vbcast.lane.b32.xlu0 %v1443, %s1448
        %v1450 = vpop.permute.xlu0 %1449
        %s1452 = sor.u32 256, 16
        %1453 = vbcast.lane.b32.xlu0 %v1443, %s1452
        %v1454 = vpop.permute.xlu0 %1453
        %s1456 = sor.u32 256, 24
        %1457 = vbcast.lane.b32.xlu0 %v1443, %s1456
        %v1458 = vpop.permute.xlu0 %1457
        %s1460 = sor.u32 256, 32
        %1461 = vbcast.lane.b32.xlu0 %v1443, %s1460
        %v1462 = vpop.permute.xlu0 %1461
        %s1464 = sor.u32 256, 40
        %1465 = vbcast.lane.b32.xlu0 %v1443, %s1464
        %v1466 = vpop.permute.xlu0 %1465
        %s1468 = sor.u32 256, 48
        %1469 = vbcast.lane.b32.xlu0 %v1443, %s1468
        %v1470 = vpop.permute.xlu0 %1469
        %s1472 = sor.u32 256, 56
        %1473 = vbcast.lane.b32.xlu0 %v1443, %s1472
        %v1474 = vpop.permute.xlu0 %1473
        %v1475 = vlaneseq
        %v1476 = vshrl.u32 %v1475, 7
        %v1477 = vsub.s32 1, %v1476
        %v1478 = vrot.slane %v1439, %v1477
        %1480 = vbcast.lane.b32.xlu0 %v1478, 256
        %v1481 = vpop.permute.xlu0 %1480
        %s1483 = sor.u32 256, 8
        %1484 = vbcast.lane.b32.xlu0 %v1478, %s1483
        %v1485 = vpop.permute.xlu0 %1484
        %s1487 = sor.u32 256, 16
        %1488 = vbcast.lane.b32.xlu0 %v1478, %s1487
        %v1489 = vpop.permute.xlu0 %1488
        %s1491 = sor.u32 256, 24
        %1492 = vbcast.lane.b32.xlu0 %v1478, %s1491
        %v1493 = vpop.permute.xlu0 %1492
        %s1495 = sor.u32 256, 32
        %1496 = vbcast.lane.b32.xlu0 %v1478, %s1495
        %v1497 = vpop.permute.xlu0 %1496
        %s1499 = sor.u32 256, 40
        %1500 = vbcast.lane.b32.xlu0 %v1478, %s1499
        %v1501 = vpop.permute.xlu0 %1500
        %s1503 = sor.u32 256, 48
        %1504 = vbcast.lane.b32.xlu0 %v1478, %s1503
        %v1505 = vpop.permute.xlu0 %1504
        %s1507 = sor.u32 256, 56
        %1508 = vbcast.lane.b32.xlu0 %v1478, %s1507
        %v1509 = vpop.permute.xlu0 %1508
        %v1510 = vlaneseq
        %v1511 = vshrl.u32 %v1510, 7
        %v1512 = vsub.s32 2, %v1511
        %v1513 = vrot.slane %v1439, %v1512
        %1515 = vbcast.lane.b32.xlu0 %v1513, 256
        %v1516 = vpop.permute.xlu0 %1515
        %s1518 = sor.u32 256, 8
        %1519 = vbcast.lane.b32.xlu0 %v1513, %s1518
        %v1520 = vpop.permute.xlu0 %1519
        %s1522 = sor.u32 256, 16
        %1523 = vbcast.lane.b32.xlu0 %v1513, %s1522
        %v1524 = vpop.permute.xlu0 %1523
        %s1526 = sor.u32 256, 24
        %1527 = vbcast.lane.b32.xlu0 %v1513, %s1526
        %v1528 = vpop.permute.xlu0 %1527
        %s1530 = sor.u32 256, 32
        %1531 = vbcast.lane.b32.xlu0 %v1513, %s1530
        %v1532 = vpop.permute.xlu0 %1531
        %s1534 = sor.u32 256, 40
        %1535 = vbcast.lane.b32.xlu0 %v1513, %s1534
        %v1536 = vpop.permute.xlu0 %1535
        %s1538 = sor.u32 256, 48
        %1539 = vbcast.lane.b32.xlu0 %v1513, %s1538
        %v1540 = vpop.permute.xlu0 %1539
        %s1542 = sor.u32 256, 56
        %1543 = vbcast.lane.b32.xlu0 %v1513, %s1542
        %v1544 = vpop.permute.xlu0 %1543
        %v1545 = vlaneseq
        %v1546 = vshrl.u32 %v1545, 7
        %v1547 = vsub.s32 3, %v1546
        %v1548 = vrot.slane %v1439, %v1547
        %1550 = vbcast.lane.b32.xlu0 %v1548, 256
        %v1551 = vpop.permute.xlu0 %1550
        %s1553 = sor.u32 256, 8
        %1554 = vbcast.lane.b32.xlu0 %v1548, %s1553
        %v1555 = vpop.permute.xlu0 %1554
        %s1557 = sor.u32 256, 16
        %1558 = vbcast.lane.b32.xlu0 %v1548, %s1557
        %v1559 = vpop.permute.xlu0 %1558
        %s1561 = sor.u32 256, 24
        %1562 = vbcast.lane.b32.xlu0 %v1548, %s1561
        %v1563 = vpop.permute.xlu0 %1562
        %s1565 = sor.u32 256, 32
        %1566 = vbcast.lane.b32.xlu0 %v1548, %s1565
        %v1567 = vpop.permute.xlu0 %1566
        %s1569 = sor.u32 256, 40
        %1570 = vbcast.lane.b32.xlu0 %v1548, %s1569
        %v1571 = vpop.permute.xlu0 %1570
        %s1573 = sor.u32 256, 48
        %1574 = vbcast.lane.b32.xlu0 %v1548, %s1573
        %v1575 = vpop.permute.xlu0 %1574
        %s1577 = sor.u32 256, 56
        %1578 = vbcast.lane.b32.xlu0 %v1548, %s1577
        %v1579 = vpop.permute.xlu0 %1578
        %v1580 = vmul.f32 %v273, %v1446
        %v1581 = vmul.f32 %v274, %v1446
        %v1582 = vmul.f32 %v275, %v1450
        %v1583 = vmul.f32 %v276, %v1450
        %v1584 = vmul.f32 %v277, %v1454
        %v1585 = vmul.f32 %v278, %v1454
        %v1586 = vmul.f32 %v279, %v1458
        %v1587 = vmul.f32 %v280, %v1458
        %v1588 = vmul.f32 %v281, %v1462
        %v1589 = vmul.f32 %v282, %v1462
        %v1590 = vmul.f32 %v283, %v1466
        %v1591 = vmul.f32 %v284, %v1466
        %v1592 = vmul.f32 %v285, %v1470
        %v1593 = vmul.f32 %v286, %v1470
        %v1594 = vmul.f32 %v287, %v1474
        %v1595 = vmul.f32 %v288, %v1474
        %v1596 = vmul.f32 %v289, %v1481
        %v1597 = vmul.f32 %v290, %v1481
        %v1598 = vmul.f32 %v291, %v1485
        %v1599 = vmul.f32 %v292, %v1485
        %v1600 = vmul.f32 %v293, %v1489
        %v1601 = vmul.f32 %v294, %v1489
        %v1602 = vmul.f32 %v295, %v1493
        %v1603 = vmul.f32 %v296, %v1493
        %v1604 = vmul.f32 %v297, %v1497
        %v1605 = vmul.f32 %v298, %v1497
        %v1606 = vmul.f32 %v299, %v1501
        %v1607 = vmul.f32 %v300, %v1501
        %v1608 = vmul.f32 %v301, %v1505
        %v1609 = vmul.f32 %v302, %v1505
        %v1610 = vmul.f32 %v303, %v1509
        %v1611 = vmul.f32 %v304, %v1509
        %v1612 = vmul.f32 %v305, %v1516
        %v1613 = vmul.f32 %v306, %v1516
        %v1614 = vmul.f32 %v307, %v1520
        %v1615 = vmul.f32 %v308, %v1520
        %v1616 = vmul.f32 %v309, %v1524
        %v1617 = vmul.f32 %v310, %v1524
        %v1618 = vmul.f32 %v311, %v1528
        %v1619 = vmul.f32 %v312, %v1528
        %v1620 = vmul.f32 %v313, %v1532
        %v1621 = vmul.f32 %v314, %v1532
        %v1622 = vmul.f32 %v315, %v1536
        %v1623 = vmul.f32 %v316, %v1536
        %v1624 = vmul.f32 %v317, %v1540
        %v1625 = vmul.f32 %v318, %v1540
        %v1626 = vmul.f32 %v319, %v1544
        %v1627 = vmul.f32 %v320, %v1544
        %v1628 = vmul.f32 %v321, %v1551
        %v1629 = vmul.f32 %v322, %v1551
        %v1630 = vmul.f32 %v323, %v1555
        %v1631 = vmul.f32 %v324, %v1555
        %v1632 = vmul.f32 %v325, %v1559
        %v1633 = vmul.f32 %v326, %v1559
        %v1634 = vmul.f32 %v327, %v1563
        %v1635 = vmul.f32 %v328, %v1563
        %v1636 = vmul.f32 %v329, %v1567
        %v1637 = vmul.f32 %v330, %v1567
        %v1638 = vmul.f32 %v331, %v1571
        %v1639 = vmul.f32 %v332, %v1571
        %v1640 = vmul.f32 %v333, %v1575
        %v1641 = vmul.f32 %v334, %v1575
        %v1642 = vmul.f32 %v335, %v1579
        %v1643 = vmul.f32 %v336, %v1579
        %1644 = vst [vmem:[%s270] sm:$0xff] %v1580
        %1645 = vst.msk [vmem:[%s270 + $0x8] sm:$0xff] %vm337, %v1581
        %1646 = vst [vmem:[%s270 + $0x10] sm:$0xff] %v1582
        %1647 = vst.msk [vmem:[%s270 + $0x18] sm:$0xff] %vm337, %v1583
        %1648 = vst [vmem:[%s270 + $0x20] sm:$0xff] %v1584
        %1649 = vst.msk [vmem:[%s270 + $0x28] sm:$0xff] %vm337, %v1585
        %1650 = vst [vmem:[%s270 + $0x30] sm:$0xff] %v1586
        %1651 = vst.msk [vmem:[%s270 + $0x38] sm:$0xff] %vm337, %v1587
        %1652 = vst [vmem:[%s270 + $0x40] sm:$0xff] %v1588
        %1653 = vst.msk [vmem:[%s270 + $0x48] sm:$0xff] %vm337, %v1589
        %1654 = vst [vmem:[%s270 + $0x50] sm:$0xff] %v1590
        %1655 = vst.msk [vmem:[%s270 + $0x58] sm:$0xff] %vm337, %v1591
        %1656 = vst [vmem:[%s270 + $0x60] sm:$0xff] %v1592
        %1657 = vst.msk [vmem:[%s270 + $0x68] sm:$0xff] %vm337, %v1593
        %1658 = vst [vmem:[%s270 + $0x70] sm:$0xff] %v1594
        %1659 = vst.msk [vmem:[%s270 + $0x78] sm:$0xff] %vm337, %v1595
        %1660 = vst [vmem:[%s270 + $0x80] sm:$0xff] %v1596
        %1661 = vst.msk [vmem:[%s270 + $0x88] sm:$0xff] %vm337, %v1597
        %1662 = vst [vmem:[%s270 + $0x90] sm:$0xff] %v1598
        %1663 = vst.msk [vmem:[%s270 + $0x98] sm:$0xff] %vm337, %v1599
        %1664 = vst [vmem:[%s270 + $0xa0] sm:$0xff] %v1600
        %1665 = vst.msk [vmem:[%s270 + $0xa8] sm:$0xff] %vm337, %v1601
        %1666 = vst [vmem:[%s270 + $0xb0] sm:$0xff] %v1602
        %1667 = vst.msk [vmem:[%s270 + $0xb8] sm:$0xff] %vm337, %v1603
        %1668 = vst [vmem:[%s270 + $0xc0] sm:$0xff] %v1604
        %1669 = vst.msk [vmem:[%s270 + $0xc8] sm:$0xff] %vm337, %v1605
        %1670 = vst [vmem:[%s270 + $0xd0] sm:$0xff] %v1606
        %1671 = vst.msk [vmem:[%s270 + $0xd8] sm:$0xff] %vm337, %v1607
        %1672 = vst [vmem:[%s270 + $0xe0] sm:$0xff] %v1608
        %1673 = vst.msk [vmem:[%s270 + $0xe8] sm:$0xff] %vm337, %v1609
        %1674 = vst [vmem:[%s270 + $0xf0] sm:$0xff] %v1610
        %1675 = vst.msk [vmem:[%s270 + $0xf8] sm:$0xff] %vm337, %v1611
        %1676 = vst [vmem:[%s270 + $0x100] sm:$0xff] %v1612
        %1677 = vst.msk [vmem:[%s270 + $0x108] sm:$0xff] %vm337, %v1613
        %1678 = vst [vmem:[%s270 + $0x110] sm:$0xff] %v1614
        %1679 = vst.msk [vmem:[%s270 + $0x118] sm:$0xff] %vm337, %v1615
        %1680 = vst [vmem:[%s270 + $0x120] sm:$0xff] %v1616
        %1681 = vst.msk [vmem:[%s270 + $0x128] sm:$0xff] %vm337, %v1617
        %1682 = vst [vmem:[%s270 + $0x130] sm:$0xff] %v1618
        %1683 = vst.msk [vmem:[%s270 + $0x138] sm:$0xff] %vm337, %v1619
        %1684 = vst [vmem:[%s270 + $0x140] sm:$0xff] %v1620
        %1685 = vst.msk [vmem:[%s270 + $0x148] sm:$0xff] %vm337, %v1621
        %1686 = vst [vmem:[%s270 + $0x150] sm:$0xff] %v1622
        %1687 = vst.msk [vmem:[%s270 + $0x158] sm:$0xff] %vm337, %v1623
        %1688 = vst [vmem:[%s270 + $0x160] sm:$0xff] %v1624
        %1689 = vst.msk [vmem:[%s270 + $0x168] sm:$0xff] %vm337, %v1625
        %1690 = vst [vmem:[%s270 + $0x170] sm:$0xff] %v1626
        %1691 = vst.msk [vmem:[%s270 + $0x178] sm:$0xff] %vm337, %v1627
        %1692 = vst [vmem:[%s270 + $0x180] sm:$0xff] %v1628
        %1693 = vst.msk [vmem:[%s270 + $0x188] sm:$0xff] %vm337, %v1629
        %1694 = vst [vmem:[%s270 + $0x190] sm:$0xff] %v1630
        %1695 = vst.msk [vmem:[%s270 + $0x198] sm:$0xff] %vm337, %v1631
        %1696 = vst [vmem:[%s270 + $0x1a0] sm:$0xff] %v1632
        %1697 = vst.msk [vmem:[%s270 + $0x1a8] sm:$0xff] %vm337, %v1633
        %1698 = vst [vmem:[%s270 + $0x1b0] sm:$0xff] %v1634
        %1699 = vst.msk [vmem:[%s270 + $0x1b8] sm:$0xff] %vm337, %v1635
        %1700 = vst [vmem:[%s270 + $0x1c0] sm:$0xff] %v1636
        %1701 = vst.msk [vmem:[%s270 + $0x1c8] sm:$0xff] %vm337, %v1637
        %1702 = vst [vmem:[%s270 + $0x1d0] sm:$0xff] %v1638
        %1703 = vst.msk [vmem:[%s270 + $0x1d8] sm:$0xff] %vm337, %v1639
        %1704 = vst [vmem:[%s270 + $0x1e0] sm:$0xff] %v1640
        %1705 = vst.msk [vmem:[%s270 + $0x1e8] sm:$0xff] %vm337, %v1641
        %1706 = vst [vmem:[%s270 + $0x1f0] sm:$0xff] %v1642
        %1707 = vst.msk [vmem:[%s270 + $0x1f8] sm:$0xff] %vm337, %v1643
        %s1708 = sand.u32 %s162, 1
        %s1709 = scalar_lea.sflag [#allocation4], %s1708
        %s1710 = sand.u32 %s162, 1
        %s1711 = smul.addr %s1710, 512
        %s1712 = scalar_lea.vmem [#allocation5], %s1711
        // Predicated region
        $region49: #{tpu_custom_call.1} parent=43 // pred_check
          %p1713 = pneg %p172
        $region50: #{tpu_custom_call.1} parent=43 // pred_check_branch
          %1715 = sbr.rel (%p1713) target = $region52
        $region51: #{tpu_custom_call.1} parent=43 // pred_region
          %s1716 = smul.u32 4, %s23
          %s1718 = ssub.s32 8192, 8192
          %1719 = vsyncadd %s1709, %s1718
          %s1720 = smul.addr %s1716, 16
          %s1721 = smul.addr %s1720, 128
          %s1722 = scalar_lea.hbm %s6, %s1721
          %s1723 = sshll.u32 %s1712, 4
          %s1724 = int_to_ptr.vmem [resolvable:$true] %s1723
          %1729 = dma.vmem_to_hbm [thread:$0]  %s1724, 8192, %s1722, %s1709, 256, 256, 16
        $region52: #{tpu_custom_call.1} parent=43 // pred_fallthru
          _
      $region44: #{tpu_custom_call.1} parent=5 // pred_fallthru
        _
      %p1730 = scmp.le.s32.totalorder 2, %s18
      // Predicated region
      $region53: #{tpu_custom_call.1} parent=5 // pred_check
        %p1731 = pneg %p1730
      $region54: #{tpu_custom_call.1} parent=5 // pred_check_branch
        %1733 = sbr.rel (%p1731) target = $region56
      $region55: #{tpu_custom_call.1} parent=5 // pred_region
        %s1734 = ssub.s32 %s18, 2
        // Predicated region
        $region57: #{tpu_custom_call.1} parent=55 // pred_check
          %p1735 = pneg %p178
        $region58: #{tpu_custom_call.1} parent=55 // pred_check_branch
          %1737 = sbr.rel (%p1735) target = $region60
        $region59: #{tpu_custom_call.1} parent=55 // pred_region
          %s1738 = sand.u32 %s163, 1
          %s1739 = scalar_lea.sflag [#allocation4], %s1738
          %s1740 = sand.u32 %s163, 1
          %s1741 = smul.addr %s1740, 512
          %s1742 = scalar_lea.vmem [#allocation5], %s1741
          %1743 = dma.done %s1739, 8192
        $region60: #{tpu_custom_call.1} parent=55 // pred_fallthru
          _
      $region56: #{tpu_custom_call.1} parent=5 // pred_fallthru
        _
    $region6: #{tpu_custom_call.1} parent=1 // loop_footer
      %s22 = sadd.s32 1, %s18
    $region7: #{tpu_custom_call.1} parent=1 // loop_footer_branch
      %17 = sbr.rel target = $region3
    $region8: #{tpu_custom_call.1} parent=1 // loop_exit
      _
    %1744 = vsyncpa [#allocation3], 1
    %s1745 = scalar_lea.sflag [#allocation3], 1
    %1746 = vsyncpa %s1745, 1
    %1747 = vsyncpa [#allocation4], 1
    %s1748 = scalar_lea.sflag [#allocation4], 1
    %1749 = vsyncpa %s1748, 1

</llo_original>
